<compile_context>
chip_gen: v7x
topology: tpu7x:2x2x1
jax: 0.10.0
libtpu: 0.0.40
codegen_flags: <defaults>
</compile_context>

<pallas_src>
import jax
import jax.numpy as jnp
from jax import lax
from jax.experimental import pallas as pl
from jax.experimental.pallas import tpu as pltpu


# ------------------------- fused BiLSTM + head kernel ------------------------
def _fused_kernel(x_ref, mask_ref,
                  wih_ref, b_ref, whh_ref,
                  gamma_ref, beta_ref, wa_ref, ba_ref, wfc_ref, bfc_ref,
                  logits_ref, attn_ref,
                  xp_ref, y_ref):
    T, Bt, G8 = xp_ref.shape
    H = G8 // 8
    D = x_ref.shape[-1]

    # ---- fused input projection for both directions, hoisted off the serial
    #      chain: one (T*Bt, D) @ (D, 8H) MXU matmul, bias folded in once. ----
    x2 = x_ref[...].reshape(T * Bt, D)                               # (T*Bt, D)
    xp = (jnp.dot(x2, wih_ref[...], preferred_element_type=jnp.float32)
          + b_ref[...])                                              # (T*Bt, 8H)
    xp_ref[...] = xp.reshape(T, Bt, G8)

    whh = whh_ref[...]                                               # (2H, 8H)

    zeros_h = jnp.zeros((Bt, H), jnp.float32)
    init = (jnp.zeros((Bt, 2 * H), jnp.float32), zeros_h, zeros_h)

    # ---- forward & backward directions share ONE fused recurrent matmul per
    #      step against the block-diagonal W_hh; gate order is i|f|o|g. ----
    def body(t, carry):
        h_cat, c_f, c_b = carry
        tb = T - 1 - t
        rec = jnp.dot(h_cat, whh, preferred_element_type=jnp.float32)  # (Bt,8H)
        xp_t = xp_ref[t]                       # (Bt, 8H) static leading index
        xp_tb = xp_ref[tb]
        gf = xp_t[:, 0:4 * H] + rec[:, 0:4 * H]
        gb = xp_tb[:, 4 * H:8 * H] + rec[:, 4 * H:8 * H]
        # one sigmoid (3H) + one tanh (H) per direction (permuted gates)
        sf = jax.nn.sigmoid(gf[:, 0:3 * H])
        sb = jax.nn.sigmoid(gb[:, 0:3 * H])
        gfa = jnp.tanh(gf[:, 3 * H:4 * H])
        gba = jnp.tanh(gb[:, 3 * H:4 * H])
        c_f = sf[:, H:2 * H] * c_f + sf[:, 0:H] * gfa
        c_b = sb[:, H:2 * H] * c_b + sb[:, 0:H] * gba
        h_f = sf[:, 2 * H:3 * H] * jnp.tanh(c_f)
        h_b = sb[:, 2 * H:3 * H] * jnp.tanh(c_b)
        # write directly into the concatenated output buffer: one store per
        # direction per step, no separate hf/hb scratch, no post-loop concat.
        y_ref[t, :, 0:H] = h_f
        y_ref[tb, :, H:2 * H] = h_b
        return (jnp.concatenate([h_f, h_b], axis=-1), c_f, c_b)

    unroll = True if T <= 32 else 4
    try:
        lax.fori_loop(0, T, body, init, unroll=unroll)
    except TypeError:  # older jax without the fori_loop unroll kwarg
        lax.fori_loop(0, T, body, init)

    # ---- fused head: LayerNorm + masked attention + FC (dropout = identity) --
    y = y_ref[...]                                                   # (T,Bt,2H)
    gamma = gamma_ref[...]                                           # (1, 2H)
    beta = beta_ref[...]                                             # (1, 2H)

    def layernorm(v):   # over last axis, eps = 1e-5 (PyTorch default)
        mu = jnp.mean(v, axis=-1, keepdims=True)
        var = jnp.mean((v - mu) ** 2, axis=-1, keepdims=True)
        return (v - mu) * lax.rsqrt(var + 1e-5) * gamma + beta

    yn = layernorm(y)                                                # (T,Bt,2H)

    scores = jnp.sum(yn * wa_ref[...], axis=-1)                      # (T, Bt)
    scores = scores.T + ba_ref[...]                                  # (Bt, T)
    scores = jnp.where(mask_ref[...] != 0, scores, -jnp.inf)

    m = jnp.max(scores, axis=1, keepdims=True)                       # (Bt, 1)
    e = jnp.exp(scores - m)                                          # (Bt, T)
    attn = e / jnp.sum(e, axis=1, keepdims=True)   # exact reciprocal (review)
    attn_ref[...] = attn                                             # lane-dense

    # context = sum_t attn[b,t] * yn[t,b,:]
    context = jnp.sum(attn.T[:, :, None] * yn, axis=0)               # (Bt, 2H)
    context = layernorm(context)                    # second ln (same params)

    logits_ref[...] = (jnp.dot(context, wfc_ref[...],
                               preferred_element_type=jnp.float32)
                       + bfc_ref[...])                               # (Bt, C)


# --------------------------------- helpers ------------------------------------
def _pick_batch_tile(B):
    # largest sublane-friendly tile that evenly divides B
    for cand in (256, 128, 64, 32, 16, 8):
        if B % cand == 0:
            return cand
    return B


def _vmem_limit_bytes():
    # per-generation budget: ~110 MiB on v5e/v6e (128 MiB VMEM), ~56 MiB on
    # v7x (64 MiB VMEM), leaving headroom for double-buffered BlockSpec inputs.
    try:
        cap = int(getattr(pltpu.get_tpu_info(), "vmem_capacity_bytes",
                          64 * 1024 * 1024))
    except Exception:
        cap = 64 * 1024 * 1024
    return int(min(cap * 7 // 8, 110 * 1024 * 1024))


# ----------------------------------- wrapper ----------------------------------
def res_bilstm_attn_forward(params, x, mask):
    B, T, D = x.shape
    H = params['whh_f'].shape[1]
    C = params['wfc'].shape[0]

    # ---- wrapper-side layout plumbing (trace-time / one-off XLA ops) ----
    def perm_rows(w):   # gate blocks along axis 0: PyTorch i|f|g|o -> i|f|o|g
        i, f, g, o = jnp.split(w, 4, axis=0)
        return jnp.concatenate([i, f, o, g], axis=0)

    def perm_cols(b):   # gate blocks along axis 1
        i, f, g, o = jnp.split(b, 4, axis=1)
        return jnp.concatenate([i, f, o, g], axis=1)

    wih_f_t = perm_rows(params['wih_f']).T                 # (D, 4H)
    wih_b_t = perm_rows(params['wih_b']).T                 # (D, 4H)
    whh_f_t = perm_rows(params['whh_f']).T                 # (H, 4H)
    whh_b_t = perm_rows(params['whh_b']).T                 # (H, 4H)

    wih_cat = jnp.concatenate([wih_f_t, wih_b_t], axis=1)  # (D, 8H)
    b_cat = jnp.concatenate([perm_cols(params['b_f']),
                             perm_cols(params['b_b'])], axis=1)   # (1, 8H)

    # block-diagonal recurrent weights: one fused matmul per recurrence step
    whh_bd = jnp.zeros((2 * H, 8 * H), jnp.float32)
    whh_bd = whh_bd.at[0:H, 0:4 * H].set(whh_f_t)
    whh_bd = whh_bd.at[H:2 * H, 4 * H:8 * H].set(whh_b_t)

    wfc_t = params['wfc'].T                                 # (2H, C)

    x_tm = jnp.transpose(x, (1, 0, 2)).astype(jnp.float32)  # (T, B, D)
    mask_i = mask.astype(jnp.int32)                          # (B, T)

    Bt = _pick_batch_tile(B)
    nb = B // Bt

    logits, attn = pl.pallas_call(
        _fused_kernel,
        out_shape=(jax.ShapeDtypeStruct((B, C), jnp.float32),
                   jax.ShapeDtypeStruct((B, T), jnp.float32)),
        grid=(nb,),
        in_specs=[
            pl.BlockSpec((T, Bt, D), lambda b: (0, b, 0)),        # x (time-major)
            pl.BlockSpec((Bt, T), lambda b: (b, 0)),              # mask
            pl.BlockSpec((D, 8 * H), lambda b: (0, 0)),           # W_ih fused
            pl.BlockSpec((1, 8 * H), lambda b: (0, 0)),           # bias fused
            pl.BlockSpec((2 * H, 8 * H), lambda b: (0, 0)),       # W_hh blockdiag
            pl.BlockSpec((1, 2 * H), lambda b: (0, 0)),           # gamma
            pl.BlockSpec((1, 2 * H), lambda b: (0, 0)),           # beta
            pl.BlockSpec((1, 2 * H), lambda b: (0, 0)),           # attn weight
            pl.BlockSpec((1, 1), lambda b: (0, 0)),               # attn bias
            pl.BlockSpec((2 * H, C), lambda b: (0, 0)),           # fc weight
            pl.BlockSpec((1, C), lambda b: (0, 0)),               # fc bias
        ],
        out_specs=(
            pl.BlockSpec((Bt, C), lambda b: (b, 0)),              # logits
            pl.BlockSpec((Bt, T), lambda b: (b, 0)),              # attn (lane-dense)
        ),
        scratch_shapes=[
            pltpu.VMEM((T, Bt, 8 * H), jnp.float32),   # fused input projections
            pltpu.VMEM((T, Bt, 2 * H), jnp.float32),   # concatenated lstm_out
        ],
        compiler_params=pltpu.CompilerParams(
            dimension_semantics=("parallel",),         # v7x megacore over batch
            vmem_limit_bytes=_vmem_limit_bytes()),
    )(x_tm, mask_i, wih_cat, b_cat, whh_bd,
      params['gamma'], params['beta'], params['wa'], params['ba'],
      wfc_t, params['bfc'])

    return logits, attn[:, :, None]


# ------------------------------ pure-JAX reference ----------------------------
def _reference(params, x, mask):
    H = params['whh_f'].shape[1]
    B, T, D = x.shape

    def run_dir(wih, whh, b, reverse):
        def step(carry, x_t):
            h, c = carry
            gates = x_t @ wih.T + h @ whh.T + b
            i = jax.nn.sigmoid(gates[:, 0 * H:1 * H])
            f = jax.nn.sigmoid(gates[:, 1 * H:2 * H])
            g = jnp.tanh(gates[:, 2 * H:3 * H])
            o = jax.nn.sigmoid(gates[:, 3 * H:4 * H])
            c = f * c + i * g
            h = o * jnp.tanh(c)
            return (h, c), h
        xs = jnp.transpose(x, (1, 0, 2))
        if reverse:
            xs = xs[::-1]
        _, hs = lax.scan(step, (jnp.zeros((B, H)), jnp.zeros((B, H))), xs)
        if reverse:
            hs = hs[::-1]
        return jnp.transpose(hs, (1, 0, 2))

    y = jnp.concatenate(
        [run_dir(params['wih_f'], params['whh_f'], params['b_f'], False),
         run_dir(params['wih_b'], params['whh_b'], params['b_b'], True)], -1)

    def ln(v):
        mu = jnp.mean(v, -1, keepdims=True)
        var = jnp.mean((v - mu) ** 2, -1, keepdims=True)
        return (v - mu) / jnp.sqrt(var + 1e-5) * params['gamma'] + params['beta']

    yn = ln(y)
    scores = jnp.sum(yn * params['wa'], -1) + params['ba']
    scores = jnp.where(mask, scores, -jnp.inf)
    attn = jax.nn.softmax(scores, axis=1)
    context = ln(jnp.sum(attn[:, :, None] * yn, axis=1))
    logits = context @ params['wfc'].T + params['bfc']
    return logits, attn[:, :, None]


# ----------------------------------- params -----------------------------------
def init_params(key, input_dim, hidden_dim, num_classes):
    H, D, C = hidden_dim, input_dim, num_classes
    ks = jax.random.split(key, 10)
    s = 1.0 / float(jnp.sqrt(H))
    u = lambda k, shape: jax.random.uniform(k, shape, jnp.float32, -s, s)
    return dict(
        wih_f=u(ks[0], (4 * H, D)), whh_f=u(ks[1], (4 * H, H)), b_f=u(ks[2], (1, 4 * H)),
        wih_b=u(ks[3], (4 * H, D)), whh_b=u(ks[4], (4 * H, H)), b_b=u(ks[5], (1, 4 * H)),
        gamma=jnp.ones((1, 2 * H), jnp.float32), beta=jnp.zeros((1, 2 * H), jnp.float32),
        wa=u(ks[6], (1, 2 * H)), ba=u(ks[7], (1, 1)),
        wfc=u(ks[8], (C, 2 * H)), bfc=u(ks[9], (1, C)),
    )


if __name__ == "__main__":
    B, T, D, H, C = 2, 8, 16, 32, 4
    key = jax.random.PRNGKey(0)
    kp, kx = jax.random.split(key)
    params = init_params(kp, D, H, C)
    x = jax.random.normal(kx, (B, T, D), jnp.float32)
    lengths = jnp.array([T, T - 3], jnp.int32)
    mask = jnp.arange(T)[None, :] < lengths[:, None]            # (B, T) bool

    logits, attn = res_bilstm_attn_forward(params, x, mask)
    jax.block_until_ready((logits, attn))

    ref_logits, ref_attn = _reference(params, x, mask)
    assert jnp.allclose(logits, ref_logits, atol=2e-3, rtol=2e-3)
    assert jnp.allclose(attn, ref_attn, atol=2e-3, rtol=2e-3)
    print("KERNEL_OK")
</pallas_src>

<mosaic_0001>
module attributes {stable_mosaic.version = 11 : i64} {
  func.func @_fused_kernel(%arg0: i32, %arg1: memref<8x2x16xf32, #tpu.memory_space<vmem>>, %arg2: memref<2x8xi32, #tpu.memory_space<vmem>>, %arg3: memref<16x256xf32, #tpu.memory_space<vmem>>, %arg4: memref<1x256xf32, #tpu.memory_space<vmem>>, %arg5: memref<64x256xf32, #tpu.memory_space<vmem>>, %arg6: memref<1x64xf32, #tpu.memory_space<vmem>>, %arg7: memref<1x64xf32, #tpu.memory_space<vmem>>, %arg8: memref<1x64xf32, #tpu.memory_space<vmem>>, %arg9: memref<1x1xf32, #tpu.memory_space<vmem>>, %arg10: memref<64x4xf32, #tpu.memory_space<vmem>>, %arg11: memref<1x4xf32, #tpu.memory_space<vmem>>, %arg12: memref<2x4xf32, #tpu.memory_space<vmem>>, %arg13: memref<2x8xf32, #tpu.memory_space<vmem>>, %arg14: memref<8x2x256xf32, #tpu.memory_space<vmem>>, %arg15: memref<8x2x64xf32, #tpu.memory_space<vmem>>) attributes {dimension_semantics = [#tpu.dimension_semantics<parallel>], iteration_bounds = array<i64: 1>, scalar_prefetch = 0 : i64, scratch_operands = 2 : i64, tpu.core_type = #tpu.core_type<tc>, window_params = [{transform_indices = @transform_0, window_bounds = array<i64: 8, 2, 16>}, {transform_indices = @transform_1, window_bounds = array<i64: 2, 8>}, {pipeline_mode = #tpu.pipeline_mode<synchronous>, transform_indices = @transform_2, window_bounds = array<i64: 16, 256>}, {pipeline_mode = #tpu.pipeline_mode<synchronous>, transform_indices = @transform_3, window_bounds = array<i64: 1, 256>}, {pipeline_mode = #tpu.pipeline_mode<synchronous>, transform_indices = @transform_4, window_bounds = array<i64: 64, 256>}, {pipeline_mode = #tpu.pipeline_mode<synchronous>, transform_indices = @transform_5, window_bounds = array<i64: 1, 64>}, {pipeline_mode = #tpu.pipeline_mode<synchronous>, transform_indices = @transform_6, window_bounds = array<i64: 1, 64>}, {pipeline_mode = #tpu.pipeline_mode<synchronous>, transform_indices = @transform_7, window_bounds = array<i64: 1, 64>}, {pipeline_mode = #tpu.pipeline_mode<synchronous>, transform_indices = @transform_8, window_bounds = array<i64: 1, 1>}, {pipeline_mode = #tpu.pipeline_mode<synchronous>, transform_indices = @transform_9, window_bounds = array<i64: 64, 4>}, {pipeline_mode = #tpu.pipeline_mode<synchronous>, transform_indices = @transform_10, window_bounds = array<i64: 1, 4>}, {transform_indices = @transform_11, window_bounds = array<i64: 2, 4>}, {transform_indices = @transform_12, window_bounds = array<i64: 2, 8>}]} {
    %c0 = arith.constant 0 : index
    %c0_0 = arith.constant 0 : index
    %c0_1 = arith.constant 0 : index
    %0 = vector.load %arg1[%c0, %c0_0, %c0_1] : memref<8x2x16xf32, #tpu.memory_space<vmem>>, vector<8x2x16xf32>
    %1 = vector.shape_cast %0 : vector<8x2x16xf32> to vector<16x16xf32>
    %c0_2 = arith.constant 0 : index
    %c0_3 = arith.constant 0 : index
    %2 = vector.load %arg3[%c0_2, %c0_3] : memref<16x256xf32, #tpu.memory_space<vmem>>, vector<16x256xf32>
    %cst = arith.constant dense<0.000000e+00> : vector<16x256xf32>
    %3 = tpu.matmul %1, %2, %cst {dimension_numbers = #tpu.dot_dimension_numbers<[1], [0], [0], [1], [0, 0, 1, 1], [], []>} : vector<16x16xf32>, vector<16x256xf32>, vector<16x256xf32> -> vector<16x256xf32>
    %c0_4 = arith.constant 0 : index
    %c0_5 = arith.constant 0 : index
    %4 = vector.load %arg4[%c0_4, %c0_5] : memref<1x256xf32, #tpu.memory_space<vmem>>, vector<1x256xf32>
    %5 = vector.broadcast %4 : vector<1x256xf32> to vector<16x256xf32>
    %6 = arith.addf %3, %5 : vector<16x256xf32>
    %7 = vector.shape_cast %6 : vector<16x256xf32> to vector<8x2x256xf32>
    %c0_6 = arith.constant 0 : index
    %c0_7 = arith.constant 0 : index
    %c0_8 = arith.constant 0 : index
    %8 = vector.load %arg14[%c0_6, %c0_7, %c0_8] : memref<8x2x256xf32, #tpu.memory_space<vmem>>, vector<8x2x256xf32>
    tpu.vector_store %arg14[%c0_6, %c0_7, %c0_8], %7 {strides = array<i32>} : memref<8x2x256xf32, #tpu.memory_space<vmem>>, vector<8x2x256xf32>,
    %c0_9 = arith.constant 0 : index
    %c0_10 = arith.constant 0 : index
    %9 = vector.load %arg5[%c0_9, %c0_10] : memref<64x256xf32, #tpu.memory_space<vmem>>, vector<64x256xf32>
    %cst_11 = arith.constant 0.000000e+00 : f32
    %10 = vector.broadcast %cst_11 : f32 to vector<2x32xf32>
    %cst_12 = arith.constant 0.000000e+00 : f32
    %11 = vector.broadcast %cst_12 : f32 to vector<2x64xf32>
    %c0_i32 = arith.constant 0 : i32
    %c7_i32 = arith.constant 7 : i32
    %12 = arith.subi %c7_i32, %c0_i32 : i32
    %cst_13 = arith.constant dense<0.000000e+00> : vector<2x256xf32>
    %13 = tpu.matmul %11, %9, %cst_13 {dimension_numbers = #tpu.dot_dimension_numbers<[1], [0], [0], [1], [0, 0, 1, 1], [], []>} : vector<2x64xf32>, vector<64x256xf32>, vector<2x256xf32> -> vector<2x256xf32>
    %14 = arith.index_cast %c0_i32 : i32 to index
    %c0_14 = arith.constant 0 : index
    %c0_15 = arith.constant 0 : index
    %15 = vector.load %arg14[%14, %c0_14, %c0_15] : memref<8x2x256xf32, #tpu.memory_space<vmem>>, vector<1x2x256xf32>
    %16 = vector.shape_cast %15 : vector<1x2x256xf32> to vector<2x256xf32>
    %17 = arith.index_cast %12 : i32 to index
    %c0_16 = arith.constant 0 : index
    %c0_17 = arith.constant 0 : index
    %18 = vector.load %arg14[%17, %c0_16, %c0_17] : memref<8x2x256xf32, #tpu.memory_space<vmem>>, vector<1x2x256xf32>
    %19 = vector.shape_cast %18 : vector<1x2x256xf32> to vector<2x256xf32>
    %20 = vector.extract_strided_slice %16 {offsets = [0, 0], sizes = [2, 128], strides = [1, 1]} : vector<2x256xf32> to vector<2x128xf32>
    %21 = vector.extract_strided_slice %13 {offsets = [0, 0], sizes = [2, 128], strides = [1, 1]} : vector<2x256xf32> to vector<2x128xf32>
    %22 = arith.addf %20, %21 : vector<2x128xf32>
    %23 = vector.extract_strided_slice %19 {offsets = [0, 128], sizes = [2, 128], strides = [1, 1]} : vector<2x256xf32> to vector<2x128xf32>
    %24 = vector.extract_strided_slice %13 {offsets = [0, 128], sizes = [2, 128], strides = [1, 1]} : vector<2x256xf32> to vector<2x128xf32>
    %25 = arith.addf %23, %24 : vector<2x128xf32>
    %26 = vector.extract_strided_slice %22 {offsets = [0, 0], sizes = [2, 96], strides = [1, 1]} : vector<2x128xf32> to vector<2x96xf32>
    %27 = arith.negf %26 : vector<2x96xf32>
    %28 = math.exp %27 : vector<2x96xf32>
    %cst_18 = arith.constant 1.000000e+00 : f32
    %29 = vector.broadcast %cst_18 : f32 to vector<2x96xf32>
    %30 = arith.addf %29, %28 : vector<2x96xf32>
    %31 = arith.divf %29, %30 : vector<2x96xf32>
    %32 = vector.extract_strided_slice %25 {offsets = [0, 0], sizes = [2, 96], strides = [1, 1]} : vector<2x128xf32> to vector<2x96xf32>
    %33 = arith.negf %32 : vector<2x96xf32>
    %34 = math.exp %33 : vector<2x96xf32>
    %cst_19 = arith.constant 1.000000e+00 : f32
    %35 = vector.broadcast %cst_19 : f32 to vector<2x96xf32>
    %36 = arith.addf %35, %34 : vector<2x96xf32>
    %37 = arith.divf %35, %36 : vector<2x96xf32>
    %38 = vector.extract_strided_slice %22 {offsets = [0, 96], sizes = [2, 32], strides = [1, 1]} : vector<2x128xf32> to vector<2x32xf32>
    %39 = math.tanh %38 : vector<2x32xf32>
    %40 = vector.extract_strided_slice %25 {offsets = [0, 96], sizes = [2, 32], strides = [1, 1]} : vector<2x128xf32> to vector<2x32xf32>
    %41 = math.tanh %40 : vector<2x32xf32>
    %42 = vector.extract_strided_slice %31 {offsets = [0, 32], sizes = [2, 32], strides = [1, 1]} : vector<2x96xf32> to vector<2x32xf32>
    %43 = arith.mulf %42, %10 : vector<2x32xf32>
    %44 = vector.extract_strided_slice %31 {offsets = [0, 0], sizes = [2, 32], strides = [1, 1]} : vector<2x96xf32> to vector<2x32xf32>
    %45 = arith.mulf %44, %39 : vector<2x32xf32>
    %46 = arith.addf %43, %45 : vector<2x32xf32>
    %47 = vector.extract_strided_slice %37 {offsets = [0, 32], sizes = [2, 32], strides = [1, 1]} : vector<2x96xf32> to vector<2x32xf32>
    %48 = arith.mulf %47, %10 : vector<2x32xf32>
    %49 = vector.extract_strided_slice %37 {offsets = [0, 0], sizes = [2, 32], strides = [1, 1]} : vector<2x96xf32> to vector<2x32xf32>
    %50 = arith.mulf %49, %41 : vector<2x32xf32>
    %51 = arith.addf %48, %50 : vector<2x32xf32>
    %52 = vector.extract_strided_slice %31 {offsets = [0, 64], sizes = [2, 32], strides = [1, 1]} : vector<2x96xf32> to vector<2x32xf32>
    %53 = math.tanh %46 : vector<2x32xf32>
    %54 = arith.mulf %52, %53 : vector<2x32xf32>
    %55 = vector.extract_strided_slice %37 {offsets = [0, 64], sizes = [2, 32], strides = [1, 1]} : vector<2x96xf32> to vector<2x32xf32>
    %56 = math.tanh %51 : vector<2x32xf32>
    %57 = arith.mulf %55, %56 : vector<2x32xf32>
    %58 = arith.index_cast %c0_i32 : i32 to index
    %c0_20 = arith.constant 0 : index
    %c0_21 = arith.constant 0 : index
    %59 = vector.load %arg15[%58, %c0_20, %c0_21] : memref<8x2x64xf32, #tpu.memory_space<vmem>>, vector<1x2x32xf32>
    %60 = vector.shape_cast %59 : vector<1x2x32xf32> to vector<2x32xf32>
    %61 = vector.shape_cast %54 : vector<2x32xf32> to vector<1x2x32xf32>
    tpu.vector_store %arg15[%58, %c0_20, %c0_21], %61 {strides = array<i32>} : memref<8x2x64xf32, #tpu.memory_space<vmem>>, vector<1x2x32xf32>,
    %62 = arith.index_cast %12 : i32 to index
    %c0_22 = arith.constant 0 : index
    %c32 = arith.constant 32 : index
    %63 = vector.load %arg15[%62, %c0_22, %c32] : memref<8x2x64xf32, #tpu.memory_space<vmem>>, vector<1x2x32xf32>
    %64 = vector.shape_cast %63 : vector<1x2x32xf32> to vector<2x32xf32>
    %65 = vector.shape_cast %57 : vector<2x32xf32> to vector<1x2x32xf32>
    tpu.vector_store %arg15[%62, %c0_22, %c32], %65 {strides = array<i32>} : memref<8x2x64xf32, #tpu.memory_space<vmem>>, vector<1x2x32xf32>,
    %66 = tpu.concatenate %54, %57 in 1 : vector<2x32xf32>, vector<2x32xf32> -> vector<2x64xf32>
    %c1_i32 = arith.constant 1 : i32
    %c7_i32_23 = arith.constant 7 : i32
    %67 = arith.subi %c7_i32_23, %c1_i32 : i32
    %cst_24 = arith.constant dense<0.000000e+00> : vector<2x256xf32>
    %68 = tpu.matmul %66, %9, %cst_24 {dimension_numbers = #tpu.dot_dimension_numbers<[1], [0], [0], [1], [0, 0, 1, 1], [], []>} : vector<2x64xf32>, vector<64x256xf32>, vector<2x256xf32> -> vector<2x256xf32>
    %69 = arith.index_cast %c1_i32 : i32 to index
    %c0_25 = arith.constant 0 : index
    %c0_26 = arith.constant 0 : index
    %70 = vector.load %arg14[%69, %c0_25, %c0_26] : memref<8x2x256xf32, #tpu.memory_space<vmem>>, vector<1x2x256xf32>
    %71 = vector.shape_cast %70 : vector<1x2x256xf32> to vector<2x256xf32>
    %72 = arith.index_cast %67 : i32 to index
    %c0_27 = arith.constant 0 : index
    %c0_28 = arith.constant 0 : index
    %73 = vector.load %arg14[%72, %c0_27, %c0_28] : memref<8x2x256xf32, #tpu.memory_space<vmem>>, vector<1x2x256xf32>
    %74 = vector.shape_cast %73 : vector<1x2x256xf32> to vector<2x256xf32>
    %75 = vector.extract_strided_slice %71 {offsets = [0, 0], sizes = [2, 128], strides = [1, 1]} : vector<2x256xf32> to vector<2x128xf32>
    %76 = vector.extract_strided_slice %68 {offsets = [0, 0], sizes = [2, 128], strides = [1, 1]} : vector<2x256xf32> to vector<2x128xf32>
    %77 = arith.addf %75, %76 : vector<2x128xf32>
    %78 = vector.extract_strided_slice %74 {offsets = [0, 128], sizes = [2, 128], strides = [1, 1]} : vector<2x256xf32> to vector<2x128xf32>
    %79 = vector.extract_strided_slice %68 {offsets = [0, 128], sizes = [2, 128], strides = [1, 1]} : vector<2x256xf32> to vector<2x128xf32>
    %80 = arith.addf %78, %79 : vector<2x128xf32>
    %81 = vector.extract_strided_slice %77 {offsets = [0, 0], sizes = [2, 96], strides = [1, 1]} : vector<2x128xf32> to vector<2x96xf32>
    %82 = arith.negf %81 : vector<2x96xf32>
    %83 = math.exp %82 : vector<2x96xf32>
    %cst_29 = arith.constant 1.000000e+00 : f32
    %84 = vector.broadcast %cst_29 : f32 to vector<2x96xf32>
    %85 = arith.addf %84, %83 : vector<2x96xf32>
    %86 = arith.divf %84, %85 : vector<2x96xf32>
    %87 = vector.extract_strided_slice %80 {offsets = [0, 0], sizes = [2, 96], strides = [1, 1]} : vector<2x128xf32> to vector<2x96xf32>
    %88 = arith.negf %87 : vector<2x96xf32>
    %89 = math.exp %88 : vector<2x96xf32>
    %cst_30 = arith.constant 1.000000e+00 : f32
    %90 = vector.broadcast %cst_30 : f32 to vector<2x96xf32>
    %91 = arith.addf %90, %89 : vector<2x96xf32>
    %92 = arith.divf %90, %91 : vector<2x96xf32>
    %93 = vector.extract_strided_slice %77 {offsets = [0, 96], sizes = [2, 32], strides = [1, 1]} : vector<2x128xf32> to vector<2x32xf32>
    %94 = math.tanh %93 : vector<2x32xf32>
    %95 = vector.extract_strided_slice %80 {offsets = [0, 96], sizes = [2, 32], strides = [1, 1]} : vector<2x128xf32> to vector<2x32xf32>
    %96 = math.tanh %95 : vector<2x32xf32>
    %97 = vector.extract_strided_slice %86 {offsets = [0, 32], sizes = [2, 32], strides = [1, 1]} : vector<2x96xf32> to vector<2x32xf32>
    %98 = arith.mulf %97, %46 : vector<2x32xf32>
    %99 = vector.extract_strided_slice %86 {offsets = [0, 0], sizes = [2, 32], strides = [1, 1]} : vector<2x96xf32> to vector<2x32xf32>
    %100 = arith.mulf %99, %94 : vector<2x32xf32>
    %101 = arith.addf %98, %100 : vector<2x32xf32>
    %102 = vector.extract_strided_slice %92 {offsets = [0, 32], sizes = [2, 32], strides = [1, 1]} : vector<2x96xf32> to vector<2x32xf32>
    %103 = arith.mulf %102, %51 : vector<2x32xf32>
    %104 = vector.extract_strided_slice %92 {offsets = [0, 0], sizes = [2, 32], strides = [1, 1]} : vector<2x96xf32> to vector<2x32xf32>
    %105 = arith.mulf %104, %96 : vector<2x32xf32>
    %106 = arith.addf %103, %105 : vector<2x32xf32>
    %107 = vector.extract_strided_slice %86 {offsets = [0, 64], sizes = [2, 32], strides = [1, 1]} : vector<2x96xf32> to vector<2x32xf32>
    %108 = math.tanh %101 : vector<2x32xf32>
    %109 = arith.mulf %107, %108 : vector<2x32xf32>
    %110 = vector.extract_strided_slice %92 {offsets = [0, 64], sizes = [2, 32], strides = [1, 1]} : vector<2x96xf32> to vector<2x32xf32>
    %111 = math.tanh %106 : vector<2x32xf32>
    %112 = arith.mulf %110, %111 : vector<2x32xf32>
    %113 = arith.index_cast %c1_i32 : i32 to index
    %c0_31 = arith.constant 0 : index
    %c0_32 = arith.constant 0 : index
    %114 = vector.load %arg15[%113, %c0_31, %c0_32] : memref<8x2x64xf32, #tpu.memory_space<vmem>>, vector<1x2x32xf32>
    %115 = vector.shape_cast %114 : vector<1x2x32xf32> to vector<2x32xf32>
    %116 = vector.shape_cast %109 : vector<2x32xf32> to vector<1x2x32xf32>
    tpu.vector_store %arg15[%113, %c0_31, %c0_32], %116 {strides = array<i32>} : memref<8x2x64xf32, #tpu.memory_space<vmem>>, vector<1x2x32xf32>,
    %117 = arith.index_cast %67 : i32 to index
    %c0_33 = arith.constant 0 : index
    %c32_34 = arith.constant 32 : index
    %118 = vector.load %arg15[%117, %c0_33, %c32_34] : memref<8x2x64xf32, #tpu.memory_space<vmem>>, vector<1x2x32xf32>
    %119 = vector.shape_cast %118 : vector<1x2x32xf32> to vector<2x32xf32>
    %120 = vector.shape_cast %112 : vector<2x32xf32> to vector<1x2x32xf32>
    tpu.vector_store %arg15[%117, %c0_33, %c32_34], %120 {strides = array<i32>} : memref<8x2x64xf32, #tpu.memory_space<vmem>>, vector<1x2x32xf32>,
    %121 = tpu.concatenate %109, %112 in 1 : vector<2x32xf32>, vector<2x32xf32> -> vector<2x64xf32>
    %c2_i32 = arith.constant 2 : i32
    %c7_i32_35 = arith.constant 7 : i32
    %122 = arith.subi %c7_i32_35, %c2_i32 : i32
    %cst_36 = arith.constant dense<0.000000e+00> : vector<2x256xf32>
    %123 = tpu.matmul %121, %9, %cst_36 {dimension_numbers = #tpu.dot_dimension_numbers<[1], [0], [0], [1], [0, 0, 1, 1], [], []>} : vector<2x64xf32>, vector<64x256xf32>, vector<2x256xf32> -> vector<2x256xf32>
    %124 = arith.index_cast %c2_i32 : i32 to index
    %c0_37 = arith.constant 0 : index
    %c0_38 = arith.constant 0 : index
    %125 = vector.load %arg14[%124, %c0_37, %c0_38] : memref<8x2x256xf32, #tpu.memory_space<vmem>>, vector<1x2x256xf32>
    %126 = vector.shape_cast %125 : vector<1x2x256xf32> to vector<2x256xf32>
    %127 = arith.index_cast %122 : i32 to index
    %c0_39 = arith.constant 0 : index
    %c0_40 = arith.constant 0 : index
    %128 = vector.load %arg14[%127, %c0_39, %c0_40] : memref<8x2x256xf32, #tpu.memory_space<vmem>>, vector<1x2x256xf32>
    %129 = vector.shape_cast %128 : vector<1x2x256xf32> to vector<2x256xf32>
    %130 = vector.extract_strided_slice %126 {offsets = [0, 0], sizes = [2, 128], strides = [1, 1]} : vector<2x256xf32> to vector<2x128xf32>
    %131 = vector.extract_strided_slice %123 {offsets = [0, 0], sizes = [2, 128], strides = [1, 1]} : vector<2x256xf32> to vector<2x128xf32>
    %132 = arith.addf %130, %131 : vector<2x128xf32>
    %133 = vector.extract_strided_slice %129 {offsets = [0, 128], sizes = [2, 128], strides = [1, 1]} : vector<2x256xf32> to vector<2x128xf32>
    %134 = vector.extract_strided_slice %123 {offsets = [0, 128], sizes = [2, 128], strides = [1, 1]} : vector<2x256xf32> to vector<2x128xf32>
    %135 = arith.addf %133, %134 : vector<2x128xf32>
    %136 = vector.extract_strided_slice %132 {offsets = [0, 0], sizes = [2, 96], strides = [1, 1]} : vector<2x128xf32> to vector<2x96xf32>
    %137 = arith.negf %136 : vector<2x96xf32>
    %138 = math.exp %137 : vector<2x96xf32>
    %cst_41 = arith.constant 1.000000e+00 : f32
    %139 = vector.broadcast %cst_41 : f32 to vector<2x96xf32>
    %140 = arith.addf %139, %138 : vector<2x96xf32>
    %141 = arith.divf %139, %140 : vector<2x96xf32>
    %142 = vector.extract_strided_slice %135 {offsets = [0, 0], sizes = [2, 96], strides = [1, 1]} : vector<2x128xf32> to vector<2x96xf32>
    %143 = arith.negf %142 : vector<2x96xf32>
    %144 = math.exp %143 : vector<2x96xf32>
    %cst_42 = arith.constant 1.000000e+00 : f32
    %145 = vector.broadcast %cst_42 : f32 to vector<2x96xf32>
    %146 = arith.addf %145, %144 : vector<2x96xf32>
    %147 = arith.divf %145, %146 : vector<2x96xf32>
    %148 = vector.extract_strided_slice %132 {offsets = [0, 96], sizes = [2, 32], strides = [1, 1]} : vector<2x128xf32> to vector<2x32xf32>
    %149 = math.tanh %148 : vector<2x32xf32>
    %150 = vector.extract_strided_slice %135 {offsets = [0, 96], sizes = [2, 32], strides = [1, 1]} : vector<2x128xf32> to vector<2x32xf32>
    %151 = math.tanh %150 : vector<2x32xf32>
    %152 = vector.extract_strided_slice %141 {offsets = [0, 32], sizes = [2, 32], strides = [1, 1]} : vector<2x96xf32> to vector<2x32xf32>
    %153 = arith.mulf %152, %101 : vector<2x32xf32>
    %154 = vector.extract_strided_slice %141 {offsets = [0, 0], sizes = [2, 32], strides = [1, 1]} : vector<2x96xf32> to vector<2x32xf32>
    %155 = arith.mulf %154, %149 : vector<2x32xf32>
    %156 = arith.addf %153, %155 : vector<2x32xf32>
    %157 = vector.extract_strided_slice %147 {offsets = [0, 32], sizes = [2, 32], strides = [1, 1]} : vector<2x96xf32> to vector<2x32xf32>
    %158 = arith.mulf %157, %106 : vector<2x32xf32>
    %159 = vector.extract_strided_slice %147 {offsets = [0, 0], sizes = [2, 32], strides = [1, 1]} : vector<2x96xf32> to vector<2x32xf32>
    %160 = arith.mulf %159, %151 : vector<2x32xf32>
    %161 = arith.addf %158, %160 : vector<2x32xf32>
    %162 = vector.extract_strided_slice %141 {offsets = [0, 64], sizes = [2, 32], strides = [1, 1]} : vector<2x96xf32> to vector<2x32xf32>
    %163 = math.tanh %156 : vector<2x32xf32>
    %164 = arith.mulf %162, %163 : vector<2x32xf32>
    %165 = vector.extract_strided_slice %147 {offsets = [0, 64], sizes = [2, 32], strides = [1, 1]} : vector<2x96xf32> to vector<2x32xf32>
    %166 = math.tanh %161 : vector<2x32xf32>
    %167 = arith.mulf %165, %166 : vector<2x32xf32>
    %168 = arith.index_cast %c2_i32 : i32 to index
    %c0_43 = arith.constant 0 : index
    %c0_44 = arith.constant 0 : index
    %169 = vector.load %arg15[%168, %c0_43, %c0_44] : memref<8x2x64xf32, #tpu.memory_space<vmem>>, vector<1x2x32xf32>
    %170 = vector.shape_cast %169 : vector<1x2x32xf32> to vector<2x32xf32>
    %171 = vector.shape_cast %164 : vector<2x32xf32> to vector<1x2x32xf32>
    tpu.vector_store %arg15[%168, %c0_43, %c0_44], %171 {strides = array<i32>} : memref<8x2x64xf32, #tpu.memory_space<vmem>>, vector<1x2x32xf32>,
    %172 = arith.index_cast %122 : i32 to index
    %c0_45 = arith.constant 0 : index
    %c32_46 = arith.constant 32 : index
    %173 = vector.load %arg15[%172, %c0_45, %c32_46] : memref<8x2x64xf32, #tpu.memory_space<vmem>>, vector<1x2x32xf32>
    %174 = vector.shape_cast %173 : vector<1x2x32xf32> to vector<2x32xf32>
    %175 = vector.shape_cast %167 : vector<2x32xf32> to vector<1x2x32xf32>
    tpu.vector_store %arg15[%172, %c0_45, %c32_46], %175 {strides = array<i32>} : memref<8x2x64xf32, #tpu.memory_space<vmem>>, vector<1x2x32xf32>,
    %176 = tpu.concatenate %164, %167 in 1 : vector<2x32xf32>, vector<2x32xf32> -> vector<2x64xf32>
    %c3_i32 = arith.constant 3 : i32
    %c7_i32_47 = arith.constant 7 : i32
    %177 = arith.subi %c7_i32_47, %c3_i32 : i32
    %cst_48 = arith.constant dense<0.000000e+00> : vector<2x256xf32>
    %178 = tpu.matmul %176, %9, %cst_48 {dimension_numbers = #tpu.dot_dimension_numbers<[1], [0], [0], [1], [0, 0, 1, 1], [], []>} : vector<2x64xf32>, vector<64x256xf32>, vector<2x256xf32> -> vector<2x256xf32>
    %179 = arith.index_cast %c3_i32 : i32 to index
    %c0_49 = arith.constant 0 : index
    %c0_50 = arith.constant 0 : index
    %180 = vector.load %arg14[%179, %c0_49, %c0_50] : memref<8x2x256xf32, #tpu.memory_space<vmem>>, vector<1x2x256xf32>
    %181 = vector.shape_cast %180 : vector<1x2x256xf32> to vector<2x256xf32>
    %182 = arith.index_cast %177 : i32 to index
    %c0_51 = arith.constant 0 : index
    %c0_52 = arith.constant 0 : index
    %183 = vector.load %arg14[%182, %c0_51, %c0_52] : memref<8x2x256xf32, #tpu.memory_space<vmem>>, vector<1x2x256xf32>
    %184 = vector.shape_cast %183 : vector<1x2x256xf32> to vector<2x256xf32>
    %185 = vector.extract_strided_slice %181 {offsets = [0, 0], sizes = [2, 128], strides = [1, 1]} : vector<2x256xf32> to vector<2x128xf32>
    %186 = vector.extract_strided_slice %178 {offsets = [0, 0], sizes = [2, 128], strides = [1, 1]} : vector<2x256xf32> to vector<2x128xf32>
    %187 = arith.addf %185, %186 : vector<2x128xf32>
    %188 = vector.extract_strided_slice %184 {offsets = [0, 128], sizes = [2, 128], strides = [1, 1]} : vector<2x256xf32> to vector<2x128xf32>
    %189 = vector.extract_strided_slice %178 {offsets = [0, 128], sizes = [2, 128], strides = [1, 1]} : vector<2x256xf32> to vector<2x128xf32>
    %190 = arith.addf %188, %189 : vector<2x128xf32>
    %191 = vector.extract_strided_slice %187 {offsets = [0, 0], sizes = [2, 96], strides = [1, 1]} : vector<2x128xf32> to vector<2x96xf32>
    %192 = arith.negf %191 : vector<2x96xf32>
    %193 = math.exp %192 : vector<2x96xf32>
    %cst_53 = arith.constant 1.000000e+00 : f32
    %194 = vector.broadcast %cst_53 : f32 to vector<2x96xf32>
    %195 = arith.addf %194, %193 : vector<2x96xf32>
    %196 = arith.divf %194, %195 : vector<2x96xf32>
    %197 = vector.extract_strided_slice %190 {offsets = [0, 0], sizes = [2, 96], strides = [1, 1]} : vector<2x128xf32> to vector<2x96xf32>
    %198 = arith.negf %197 : vector<2x96xf32>
    %199 = math.exp %198 : vector<2x96xf32>
    %cst_54 = arith.constant 1.000000e+00 : f32
    %200 = vector.broadcast %cst_54 : f32 to vector<2x96xf32>
    %201 = arith.addf %200, %199 : vector<2x96xf32>
    %202 = arith.divf %200, %201 : vector<2x96xf32>
    %203 = vector.extract_strided_slice %187 {offsets = [0, 96], sizes = [2, 32], strides = [1, 1]} : vector<2x128xf32> to vector<2x32xf32>
    %204 = math.tanh %203 : vector<2x32xf32>
    %205 = vector.extract_strided_slice %190 {offsets = [0, 96], sizes = [2, 32], strides = [1, 1]} : vector<2x128xf32> to vector<2x32xf32>
    %206 = math.tanh %205 : vector<2x32xf32>
    %207 = vector.extract_strided_slice %196 {offsets = [0, 32], sizes = [2, 32], strides = [1, 1]} : vector<2x96xf32> to vector<2x32xf32>
    %208 = arith.mulf %207, %156 : vector<2x32xf32>
    %209 = vector.extract_strided_slice %196 {offsets = [0, 0], sizes = [2, 32], strides = [1, 1]} : vector<2x96xf32> to vector<2x32xf32>
    %210 = arith.mulf %209, %204 : vector<2x32xf32>
    %211 = arith.addf %208, %210 : vector<2x32xf32>
    %212 = vector.extract_strided_slice %202 {offsets = [0, 32], sizes = [2, 32], strides = [1, 1]} : vector<2x96xf32> to vector<2x32xf32>
    %213 = arith.mulf %212, %161 : vector<2x32xf32>
    %214 = vector.extract_strided_slice %202 {offsets = [0, 0], sizes = [2, 32], strides = [1, 1]} : vector<2x96xf32> to vector<2x32xf32>
    %215 = arith.mulf %214, %206 : vector<2x32xf32>
    %216 = arith.addf %213, %215 : vector<2x32xf32>
    %217 = vector.extract_strided_slice %196 {offsets = [0, 64], sizes = [2, 32], strides = [1, 1]} : vector<2x96xf32> to vector<2x32xf32>
    %218 = math.tanh %211 : vector<2x32xf32>
    %219 = arith.mulf %217, %218 : vector<2x32xf32>
    %220 = vector.extract_strided_slice %202 {offsets = [0, 64], sizes = [2, 32], strides = [1, 1]} : vector<2x96xf32> to vector<2x32xf32>
    %221 = math.tanh %216 : vector<2x32xf32>
    %222 = arith.mulf %220, %221 : vector<2x32xf32>
    %223 = arith.index_cast %c3_i32 : i32 to index
    %c0_55 = arith.constant 0 : index
    %c0_56 = arith.constant 0 : index
    %224 = vector.load %arg15[%223, %c0_55, %c0_56] : memref<8x2x64xf32, #tpu.memory_space<vmem>>, vector<1x2x32xf32>
    %225 = vector.shape_cast %224 : vector<1x2x32xf32> to vector<2x32xf32>
    %226 = vector.shape_cast %219 : vector<2x32xf32> to vector<1x2x32xf32>
    tpu.vector_store %arg15[%223, %c0_55, %c0_56], %226 {strides = array<i32>} : memref<8x2x64xf32, #tpu.memory_space<vmem>>, vector<1x2x32xf32>,
    %227 = arith.index_cast %177 : i32 to index
    %c0_57 = arith.constant 0 : index
    %c32_58 = arith.constant 32 : index
    %228 = vector.load %arg15[%227, %c0_57, %c32_58] : memref<8x2x64xf32, #tpu.memory_space<vmem>>, vector<1x2x32xf32>
    %229 = vector.shape_cast %228 : vector<1x2x32xf32> to vector<2x32xf32>
    %230 = vector.shape_cast %222 : vector<2x32xf32> to vector<1x2x32xf32>
    tpu.vector_store %arg15[%227, %c0_57, %c32_58], %230 {strides = array<i32>} : memref<8x2x64xf32, #tpu.memory_space<vmem>>, vector<1x2x32xf32>,
    %231 = tpu.concatenate %219, %222 in 1 : vector<2x32xf32>, vector<2x32xf32> -> vector<2x64xf32>
    %c4_i32 = arith.constant 4 : i32
    %c7_i32_59 = arith.constant 7 : i32
    %232 = arith.subi %c7_i32_59, %c4_i32 : i32
    %cst_60 = arith.constant dense<0.000000e+00> : vector<2x256xf32>
    %233 = tpu.matmul %231, %9, %cst_60 {dimension_numbers = #tpu.dot_dimension_numbers<[1], [0], [0], [1], [0, 0, 1, 1], [], []>} : vector<2x64xf32>, vector<64x256xf32>, vector<2x256xf32> -> vector<2x256xf32>
    %234 = arith.index_cast %c4_i32 : i32 to index
    %c0_61 = arith.constant 0 : index
    %c0_62 = arith.constant 0 : index
    %235 = vector.load %arg14[%234, %c0_61, %c0_62] : memref<8x2x256xf32, #tpu.memory_space<vmem>>, vector<1x2x256xf32>
    %236 = vector.shape_cast %235 : vector<1x2x256xf32> to vector<2x256xf32>
    %237 = arith.index_cast %232 : i32 to index
    %c0_63 = arith.constant 0 : index
    %c0_64 = arith.constant 0 : index
    %238 = vector.load %arg14[%237, %c0_63, %c0_64] : memref<8x2x256xf32, #tpu.memory_space<vmem>>, vector<1x2x256xf32>
    %239 = vector.shape_cast %238 : vector<1x2x256xf32> to vector<2x256xf32>
    %240 = vector.extract_strided_slice %236 {offsets = [0, 0], sizes = [2, 128], strides = [1, 1]} : vector<2x256xf32> to vector<2x128xf32>
    %241 = vector.extract_strided_slice %233 {offsets = [0, 0], sizes = [2, 128], strides = [1, 1]} : vector<2x256xf32> to vector<2x128xf32>
    %242 = arith.addf %240, %241 : vector<2x128xf32>
    %243 = vector.extract_strided_slice %239 {offsets = [0, 128], sizes = [2, 128], strides = [1, 1]} : vector<2x256xf32> to vector<2x128xf32>
    %244 = vector.extract_strided_slice %233 {offsets = [0, 128], sizes = [2, 128], strides = [1, 1]} : vector<2x256xf32> to vector<2x128xf32>
    %245 = arith.addf %243, %244 : vector<2x128xf32>
    %246 = vector.extract_strided_slice %242 {offsets = [0, 0], sizes = [2, 96], strides = [1, 1]} : vector<2x128xf32> to vector<2x96xf32>
    %247 = arith.negf %246 : vector<2x96xf32>
    %248 = math.exp %247 : vector<2x96xf32>
    %cst_65 = arith.constant 1.000000e+00 : f32
    %249 = vector.broadcast %cst_65 : f32 to vector<2x96xf32>
    %250 = arith.addf %249, %248 : vector<2x96xf32>
    %251 = arith.divf %249, %250 : vector<2x96xf32>
    %252 = vector.extract_strided_slice %245 {offsets = [0, 0], sizes = [2, 96], strides = [1, 1]} : vector<2x128xf32> to vector<2x96xf32>
    %253 = arith.negf %252 : vector<2x96xf32>
    %254 = math.exp %253 : vector<2x96xf32>
    %cst_66 = arith.constant 1.000000e+00 : f32
    %255 = vector.broadcast %cst_66 : f32 to vector<2x96xf32>
    %256 = arith.addf %255, %254 : vector<2x96xf32>
    %257 = arith.divf %255, %256 : vector<2x96xf32>
    %258 = vector.extract_strided_slice %242 {offsets = [0, 96], sizes = [2, 32], strides = [1, 1]} : vector<2x128xf32> to vector<2x32xf32>
    %259 = math.tanh %258 : vector<2x32xf32>
    %260 = vector.extract_strided_slice %245 {offsets = [0, 96], sizes = [2, 32], strides = [1, 1]} : vector<2x128xf32> to vector<2x32xf32>
    %261 = math.tanh %260 : vector<2x32xf32>
    %262 = vector.extract_strided_slice %251 {offsets = [0, 32], sizes = [2, 32], strides = [1, 1]} : vector<2x96xf32> to vector<2x32xf32>
    %263 = arith.mulf %262, %211 : vector<2x32xf32>
    %264 = vector.extract_strided_slice %251 {offsets = [0, 0], sizes = [2, 32], strides = [1, 1]} : vector<2x96xf32> to vector<2x32xf32>
    %265 = arith.mulf %264, %259 : vector<2x32xf32>
    %266 = arith.addf %263, %265 : vector<2x32xf32>
    %267 = vector.extract_strided_slice %257 {offsets = [0, 32], sizes = [2, 32], strides = [1, 1]} : vector<2x96xf32> to vector<2x32xf32>
    %268 = arith.mulf %267, %216 : vector<2x32xf32>
    %269 = vector.extract_strided_slice %257 {offsets = [0, 0], sizes = [2, 32], strides = [1, 1]} : vector<2x96xf32> to vector<2x32xf32>
    %270 = arith.mulf %269, %261 : vector<2x32xf32>
    %271 = arith.addf %268, %270 : vector<2x32xf32>
    %272 = vector.extract_strided_slice %251 {offsets = [0, 64], sizes = [2, 32], strides = [1, 1]} : vector<2x96xf32> to vector<2x32xf32>
    %273 = math.tanh %266 : vector<2x32xf32>
    %274 = arith.mulf %272, %273 : vector<2x32xf32>
    %275 = vector.extract_strided_slice %257 {offsets = [0, 64], sizes = [2, 32], strides = [1, 1]} : vector<2x96xf32> to vector<2x32xf32>
    %276 = math.tanh %271 : vector<2x32xf32>
    %277 = arith.mulf %275, %276 : vector<2x32xf32>
    %278 = arith.index_cast %c4_i32 : i32 to index
    %c0_67 = arith.constant 0 : index
    %c0_68 = arith.constant 0 : index
    %279 = vector.load %arg15[%278, %c0_67, %c0_68] : memref<8x2x64xf32, #tpu.memory_space<vmem>>, vector<1x2x32xf32>
    %280 = vector.shape_cast %279 : vector<1x2x32xf32> to vector<2x32xf32>
    %281 = vector.shape_cast %274 : vector<2x32xf32> to vector<1x2x32xf32>
    tpu.vector_store %arg15[%278, %c0_67, %c0_68], %281 {strides = array<i32>} : memref<8x2x64xf32, #tpu.memory_space<vmem>>, vector<1x2x32xf32>,
    %282 = arith.index_cast %232 : i32 to index
    %c0_69 = arith.constant 0 : index
    %c32_70 = arith.constant 32 : index
    %283 = vector.load %arg15[%282, %c0_69, %c32_70] : memref<8x2x64xf32, #tpu.memory_space<vmem>>, vector<1x2x32xf32>
    %284 = vector.shape_cast %283 : vector<1x2x32xf32> to vector<2x32xf32>
    %285 = vector.shape_cast %277 : vector<2x32xf32> to vector<1x2x32xf32>
    tpu.vector_store %arg15[%282, %c0_69, %c32_70], %285 {strides = array<i32>} : memref<8x2x64xf32, #tpu.memory_space<vmem>>, vector<1x2x32xf32>,
    %286 = tpu.concatenate %274, %277 in 1 : vector<2x32xf32>, vector<2x32xf32> -> vector<2x64xf32>
    %c5_i32 = arith.constant 5 : i32
    %c7_i32_71 = arith.constant 7 : i32
    %287 = arith.subi %c7_i32_71, %c5_i32 : i32
    %cst_72 = arith.constant dense<0.000000e+00> : vector<2x256xf32>
    %288 = tpu.matmul %286, %9, %cst_72 {dimension_numbers = #tpu.dot_dimension_numbers<[1], [0], [0], [1], [0, 0, 1, 1], [], []>} : vector<2x64xf32>, vector<64x256xf32>, vector<2x256xf32> -> vector<2x256xf32>
    %289 = arith.index_cast %c5_i32 : i32 to index
    %c0_73 = arith.constant 0 : index
    %c0_74 = arith.constant 0 : index
    %290 = vector.load %arg14[%289, %c0_73, %c0_74] : memref<8x2x256xf32, #tpu.memory_space<vmem>>, vector<1x2x256xf32>
    %291 = vector.shape_cast %290 : vector<1x2x256xf32> to vector<2x256xf32>
    %292 = arith.index_cast %287 : i32 to index
    %c0_75 = arith.constant 0 : index
    %c0_76 = arith.constant 0 : index
    %293 = vector.load %arg14[%292, %c0_75, %c0_76] : memref<8x2x256xf32, #tpu.memory_space<vmem>>, vector<1x2x256xf32>
    %294 = vector.shape_cast %293 : vector<1x2x256xf32> to vector<2x256xf32>
    %295 = vector.extract_strided_slice %291 {offsets = [0, 0], sizes = [2, 128], strides = [1, 1]} : vector<2x256xf32> to vector<2x128xf32>
    %296 = vector.extract_strided_slice %288 {offsets = [0, 0], sizes = [2, 128], strides = [1, 1]} : vector<2x256xf32> to vector<2x128xf32>
    %297 = arith.addf %295, %296 : vector<2x128xf32>
    %298 = vector.extract_strided_slice %294 {offsets = [0, 128], sizes = [2, 128], strides = [1, 1]} : vector<2x256xf32> to vector<2x128xf32>
    %299 = vector.extract_strided_slice %288 {offsets = [0, 128], sizes = [2, 128], strides = [1, 1]} : vector<2x256xf32> to vector<2x128xf32>
    %300 = arith.addf %298, %299 : vector<2x128xf32>
    %301 = vector.extract_strided_slice %297 {offsets = [0, 0], sizes = [2, 96], strides = [1, 1]} : vector<2x128xf32> to vector<2x96xf32>
    %302 = arith.negf %301 : vector<2x96xf32>
    %303 = math.exp %302 : vector<2x96xf32>
    %cst_77 = arith.constant 1.000000e+00 : f32
    %304 = vector.broadcast %cst_77 : f32 to vector<2x96xf32>
    %305 = arith.addf %304, %303 : vector<2x96xf32>
    %306 = arith.divf %304, %305 : vector<2x96xf32>
    %307 = vector.extract_strided_slice %300 {offsets = [0, 0], sizes = [2, 96], strides = [1, 1]} : vector<2x128xf32> to vector<2x96xf32>
    %308 = arith.negf %307 : vector<2x96xf32>
    %309 = math.exp %308 : vector<2x96xf32>
    %cst_78 = arith.constant 1.000000e+00 : f32
    %310 = vector.broadcast %cst_78 : f32 to vector<2x96xf32>
    %311 = arith.addf %310, %309 : vector<2x96xf32>
    %312 = arith.divf %310, %311 : vector<2x96xf32>
    %313 = vector.extract_strided_slice %297 {offsets = [0, 96], sizes = [2, 32], strides = [1, 1]} : vector<2x128xf32> to vector<2x32xf32>
    %314 = math.tanh %313 : vector<2x32xf32>
    %315 = vector.extract_strided_slice %300 {offsets = [0, 96], sizes = [2, 32], strides = [1, 1]} : vector<2x128xf32> to vector<2x32xf32>
    %316 = math.tanh %315 : vector<2x32xf32>
    %317 = vector.extract_strided_slice %306 {offsets = [0, 32], sizes = [2, 32], strides = [1, 1]} : vector<2x96xf32> to vector<2x32xf32>
    %318 = arith.mulf %317, %266 : vector<2x32xf32>
    %319 = vector.extract_strided_slice %306 {offsets = [0, 0], sizes = [2, 32], strides = [1, 1]} : vector<2x96xf32> to vector<2x32xf32>
    %320 = arith.mulf %319, %314 : vector<2x32xf32>
    %321 = arith.addf %318, %320 : vector<2x32xf32>
    %322 = vector.extract_strided_slice %312 {offsets = [0, 32], sizes = [2, 32], strides = [1, 1]} : vector<2x96xf32> to vector<2x32xf32>
    %323 = arith.mulf %322, %271 : vector<2x32xf32>
    %324 = vector.extract_strided_slice %312 {offsets = [0, 0], sizes = [2, 32], strides = [1, 1]} : vector<2x96xf32> to vector<2x32xf32>
    %325 = arith.mulf %324, %316 : vector<2x32xf32>
    %326 = arith.addf %323, %325 : vector<2x32xf32>
    %327 = vector.extract_strided_slice %306 {offsets = [0, 64], sizes = [2, 32], strides = [1, 1]} : vector<2x96xf32> to vector<2x32xf32>
    %328 = math.tanh %321 : vector<2x32xf32>
    %329 = arith.mulf %327, %328 : vector<2x32xf32>
    %330 = vector.extract_strided_slice %312 {offsets = [0, 64], sizes = [2, 32], strides = [1, 1]} : vector<2x96xf32> to vector<2x32xf32>
    %331 = math.tanh %326 : vector<2x32xf32>
    %332 = arith.mulf %330, %331 : vector<2x32xf32>
    %333 = arith.index_cast %c5_i32 : i32 to index
    %c0_79 = arith.constant 0 : index
    %c0_80 = arith.constant 0 : index
    %334 = vector.load %arg15[%333, %c0_79, %c0_80] : memref<8x2x64xf32, #tpu.memory_space<vmem>>, vector<1x2x32xf32>
    %335 = vector.shape_cast %334 : vector<1x2x32xf32> to vector<2x32xf32>
    %336 = vector.shape_cast %329 : vector<2x32xf32> to vector<1x2x32xf32>
    tpu.vector_store %arg15[%333, %c0_79, %c0_80], %336 {strides = array<i32>} : memref<8x2x64xf32, #tpu.memory_space<vmem>>, vector<1x2x32xf32>,
    %337 = arith.index_cast %287 : i32 to index
    %c0_81 = arith.constant 0 : index
    %c32_82 = arith.constant 32 : index
    %338 = vector.load %arg15[%337, %c0_81, %c32_82] : memref<8x2x64xf32, #tpu.memory_space<vmem>>, vector<1x2x32xf32>
    %339 = vector.shape_cast %338 : vector<1x2x32xf32> to vector<2x32xf32>
    %340 = vector.shape_cast %332 : vector<2x32xf32> to vector<1x2x32xf32>
    tpu.vector_store %arg15[%337, %c0_81, %c32_82], %340 {strides = array<i32>} : memref<8x2x64xf32, #tpu.memory_space<vmem>>, vector<1x2x32xf32>,
    %341 = tpu.concatenate %329, %332 in 1 : vector<2x32xf32>, vector<2x32xf32> -> vector<2x64xf32>
    %c6_i32 = arith.constant 6 : i32
    %c7_i32_83 = arith.constant 7 : i32
    %342 = arith.subi %c7_i32_83, %c6_i32 : i32
    %cst_84 = arith.constant dense<0.000000e+00> : vector<2x256xf32>
    %343 = tpu.matmul %341, %9, %cst_84 {dimension_numbers = #tpu.dot_dimension_numbers<[1], [0], [0], [1], [0, 0, 1, 1], [], []>} : vector<2x64xf32>, vector<64x256xf32>, vector<2x256xf32> -> vector<2x256xf32>
    %344 = arith.index_cast %c6_i32 : i32 to index
    %c0_85 = arith.constant 0 : index
    %c0_86 = arith.constant 0 : index
    %345 = vector.load %arg14[%344, %c0_85, %c0_86] : memref<8x2x256xf32, #tpu.memory_space<vmem>>, vector<1x2x256xf32>
    %346 = vector.shape_cast %345 : vector<1x2x256xf32> to vector<2x256xf32>
    %347 = arith.index_cast %342 : i32 to index
    %c0_87 = arith.constant 0 : index
    %c0_88 = arith.constant 0 : index
    %348 = vector.load %arg14[%347, %c0_87, %c0_88] : memref<8x2x256xf32, #tpu.memory_space<vmem>>, vector<1x2x256xf32>
    %349 = vector.shape_cast %348 : vector<1x2x256xf32> to vector<2x256xf32>
    %350 = vector.extract_strided_slice %346 {offsets = [0, 0], sizes = [2, 128], strides = [1, 1]} : vector<2x256xf32> to vector<2x128xf32>
    %351 = vector.extract_strided_slice %343 {offsets = [0, 0], sizes = [2, 128], strides = [1, 1]} : vector<2x256xf32> to vector<2x128xf32>
    %352 = arith.addf %350, %351 : vector<2x128xf32>
    %353 = vector.extract_strided_slice %349 {offsets = [0, 128], sizes = [2, 128], strides = [1, 1]} : vector<2x256xf32> to vector<2x128xf32>
    %354 = vector.extract_strided_slice %343 {offsets = [0, 128], sizes = [2, 128], strides = [1, 1]} : vector<2x256xf32> to vector<2x128xf32>
    %355 = arith.addf %353, %354 : vector<2x128xf32>
    %356 = vector.extract_strided_slice %352 {offsets = [0, 0], sizes = [2, 96], strides = [1, 1]} : vector<2x128xf32> to vector<2x96xf32>
    %357 = arith.negf %356 : vector<2x96xf32>
    %358 = math.exp %357 : vector<2x96xf32>
    %cst_89 = arith.constant 1.000000e+00 : f32
    %359 = vector.broadcast %cst_89 : f32 to vector<2x96xf32>
    %360 = arith.addf %359, %358 : vector<2x96xf32>
    %361 = arith.divf %359, %360 : vector<2x96xf32>
    %362 = vector.extract_strided_slice %355 {offsets = [0, 0], sizes = [2, 96], strides = [1, 1]} : vector<2x128xf32> to vector<2x96xf32>
    %363 = arith.negf %362 : vector<2x96xf32>
    %364 = math.exp %363 : vector<2x96xf32>
    %cst_90 = arith.constant 1.000000e+00 : f32
    %365 = vector.broadcast %cst_90 : f32 to vector<2x96xf32>
    %366 = arith.addf %365, %364 : vector<2x96xf32>
    %367 = arith.divf %365, %366 : vector<2x96xf32>
    %368 = vector.extract_strided_slice %352 {offsets = [0, 96], sizes = [2, 32], strides = [1, 1]} : vector<2x128xf32> to vector<2x32xf32>
    %369 = math.tanh %368 : vector<2x32xf32>
    %370 = vector.extract_strided_slice %355 {offsets = [0, 96], sizes = [2, 32], strides = [1, 1]} : vector<2x128xf32> to vector<2x32xf32>
    %371 = math.tanh %370 : vector<2x32xf32>
    %372 = vector.extract_strided_slice %361 {offsets = [0, 32], sizes = [2, 32], strides = [1, 1]} : vector<2x96xf32> to vector<2x32xf32>
    %373 = arith.mulf %372, %321 : vector<2x32xf32>
    %374 = vector.extract_strided_slice %361 {offsets = [0, 0], sizes = [2, 32], strides = [1, 1]} : vector<2x96xf32> to vector<2x32xf32>
    %375 = arith.mulf %374, %369 : vector<2x32xf32>
    %376 = arith.addf %373, %375 : vector<2x32xf32>
    %377 = vector.extract_strided_slice %367 {offsets = [0, 32], sizes = [2, 32], strides = [1, 1]} : vector<2x96xf32> to vector<2x32xf32>
    %378 = arith.mulf %377, %326 : vector<2x32xf32>
    %379 = vector.extract_strided_slice %367 {offsets = [0, 0], sizes = [2, 32], strides = [1, 1]} : vector<2x96xf32> to vector<2x32xf32>
    %380 = arith.mulf %379, %371 : vector<2x32xf32>
    %381 = arith.addf %378, %380 : vector<2x32xf32>
    %382 = vector.extract_strided_slice %361 {offsets = [0, 64], sizes = [2, 32], strides = [1, 1]} : vector<2x96xf32> to vector<2x32xf32>
    %383 = math.tanh %376 : vector<2x32xf32>
    %384 = arith.mulf %382, %383 : vector<2x32xf32>
    %385 = vector.extract_strided_slice %367 {offsets = [0, 64], sizes = [2, 32], strides = [1, 1]} : vector<2x96xf32> to vector<2x32xf32>
    %386 = math.tanh %381 : vector<2x32xf32>
    %387 = arith.mulf %385, %386 : vector<2x32xf32>
    %388 = arith.index_cast %c6_i32 : i32 to index
    %c0_91 = arith.constant 0 : index
    %c0_92 = arith.constant 0 : index
    %389 = vector.load %arg15[%388, %c0_91, %c0_92] : memref<8x2x64xf32, #tpu.memory_space<vmem>>, vector<1x2x32xf32>
    %390 = vector.shape_cast %389 : vector<1x2x32xf32> to vector<2x32xf32>
    %391 = vector.shape_cast %384 : vector<2x32xf32> to vector<1x2x32xf32>
    tpu.vector_store %arg15[%388, %c0_91, %c0_92], %391 {strides = array<i32>} : memref<8x2x64xf32, #tpu.memory_space<vmem>>, vector<1x2x32xf32>,
    %392 = arith.index_cast %342 : i32 to index
    %c0_93 = arith.constant 0 : index
    %c32_94 = arith.constant 32 : index
    %393 = vector.load %arg15[%392, %c0_93, %c32_94] : memref<8x2x64xf32, #tpu.memory_space<vmem>>, vector<1x2x32xf32>
    %394 = vector.shape_cast %393 : vector<1x2x32xf32> to vector<2x32xf32>
    %395 = vector.shape_cast %387 : vector<2x32xf32> to vector<1x2x32xf32>
    tpu.vector_store %arg15[%392, %c0_93, %c32_94], %395 {strides = array<i32>} : memref<8x2x64xf32, #tpu.memory_space<vmem>>, vector<1x2x32xf32>,
    %396 = tpu.concatenate %384, %387 in 1 : vector<2x32xf32>, vector<2x32xf32> -> vector<2x64xf32>
    %c7_i32_95 = arith.constant 7 : i32
    %c7_i32_96 = arith.constant 7 : i32
    %397 = arith.subi %c7_i32_96, %c7_i32_95 : i32
    %cst_97 = arith.constant dense<0.000000e+00> : vector<2x256xf32>
    %398 = tpu.matmul %396, %9, %cst_97 {dimension_numbers = #tpu.dot_dimension_numbers<[1], [0], [0], [1], [0, 0, 1, 1], [], []>} : vector<2x64xf32>, vector<64x256xf32>, vector<2x256xf32> -> vector<2x256xf32>
    %399 = arith.index_cast %c7_i32_95 : i32 to index
    %c0_98 = arith.constant 0 : index
    %c0_99 = arith.constant 0 : index
    %400 = vector.load %arg14[%399, %c0_98, %c0_99] : memref<8x2x256xf32, #tpu.memory_space<vmem>>, vector<1x2x256xf32>
    %401 = vector.shape_cast %400 : vector<1x2x256xf32> to vector<2x256xf32>
    %402 = arith.index_cast %397 : i32 to index
    %c0_100 = arith.constant 0 : index
    %c0_101 = arith.constant 0 : index
    %403 = vector.load %arg14[%402, %c0_100, %c0_101] : memref<8x2x256xf32, #tpu.memory_space<vmem>>, vector<1x2x256xf32>
    %404 = vector.shape_cast %403 : vector<1x2x256xf32> to vector<2x256xf32>
    %405 = vector.extract_strided_slice %401 {offsets = [0, 0], sizes = [2, 128], strides = [1, 1]} : vector<2x256xf32> to vector<2x128xf32>
    %406 = vector.extract_strided_slice %398 {offsets = [0, 0], sizes = [2, 128], strides = [1, 1]} : vector<2x256xf32> to vector<2x128xf32>
    %407 = arith.addf %405, %406 : vector<2x128xf32>
    %408 = vector.extract_strided_slice %404 {offsets = [0, 128], sizes = [2, 128], strides = [1, 1]} : vector<2x256xf32> to vector<2x128xf32>
    %409 = vector.extract_strided_slice %398 {offsets = [0, 128], sizes = [2, 128], strides = [1, 1]} : vector<2x256xf32> to vector<2x128xf32>
    %410 = arith.addf %408, %409 : vector<2x128xf32>
    %411 = vector.extract_strided_slice %407 {offsets = [0, 0], sizes = [2, 96], strides = [1, 1]} : vector<2x128xf32> to vector<2x96xf32>
    %412 = arith.negf %411 : vector<2x96xf32>
    %413 = math.exp %412 : vector<2x96xf32>
    %cst_102 = arith.constant 1.000000e+00 : f32
    %414 = vector.broadcast %cst_102 : f32 to vector<2x96xf32>
    %415 = arith.addf %414, %413 : vector<2x96xf32>
    %416 = arith.divf %414, %415 : vector<2x96xf32>
    %417 = vector.extract_strided_slice %410 {offsets = [0, 0], sizes = [2, 96], strides = [1, 1]} : vector<2x128xf32> to vector<2x96xf32>
    %418 = arith.negf %417 : vector<2x96xf32>
    %419 = math.exp %418 : vector<2x96xf32>
    %cst_103 = arith.constant 1.000000e+00 : f32
    %420 = vector.broadcast %cst_103 : f32 to vector<2x96xf32>
    %421 = arith.addf %420, %419 : vector<2x96xf32>
    %422 = arith.divf %420, %421 : vector<2x96xf32>
    %423 = vector.extract_strided_slice %407 {offsets = [0, 96], sizes = [2, 32], strides = [1, 1]} : vector<2x128xf32> to vector<2x32xf32>
    %424 = math.tanh %423 : vector<2x32xf32>
    %425 = vector.extract_strided_slice %410 {offsets = [0, 96], sizes = [2, 32], strides = [1, 1]} : vector<2x128xf32> to vector<2x32xf32>
    %426 = math.tanh %425 : vector<2x32xf32>
    %427 = vector.extract_strided_slice %416 {offsets = [0, 32], sizes = [2, 32], strides = [1, 1]} : vector<2x96xf32> to vector<2x32xf32>
    %428 = arith.mulf %427, %376 : vector<2x32xf32>
    %429 = vector.extract_strided_slice %416 {offsets = [0, 0], sizes = [2, 32], strides = [1, 1]} : vector<2x96xf32> to vector<2x32xf32>
    %430 = arith.mulf %429, %424 : vector<2x32xf32>
    %431 = arith.addf %428, %430 : vector<2x32xf32>
    %432 = vector.extract_strided_slice %422 {offsets = [0, 32], sizes = [2, 32], strides = [1, 1]} : vector<2x96xf32> to vector<2x32xf32>
    %433 = arith.mulf %432, %381 : vector<2x32xf32>
    %434 = vector.extract_strided_slice %422 {offsets = [0, 0], sizes = [2, 32], strides = [1, 1]} : vector<2x96xf32> to vector<2x32xf32>
    %435 = arith.mulf %434, %426 : vector<2x32xf32>
    %436 = arith.addf %433, %435 : vector<2x32xf32>
    %437 = vector.extract_strided_slice %416 {offsets = [0, 64], sizes = [2, 32], strides = [1, 1]} : vector<2x96xf32> to vector<2x32xf32>
    %438 = math.tanh %431 : vector<2x32xf32>
    %439 = arith.mulf %437, %438 : vector<2x32xf32>
    %440 = vector.extract_strided_slice %422 {offsets = [0, 64], sizes = [2, 32], strides = [1, 1]} : vector<2x96xf32> to vector<2x32xf32>
    %441 = math.tanh %436 : vector<2x32xf32>
    %442 = arith.mulf %440, %441 : vector<2x32xf32>
    %443 = arith.index_cast %c7_i32_95 : i32 to index
    %c0_104 = arith.constant 0 : index
    %c0_105 = arith.constant 0 : index
    %444 = vector.load %arg15[%443, %c0_104, %c0_105] : memref<8x2x64xf32, #tpu.memory_space<vmem>>, vector<1x2x32xf32>
    %445 = vector.shape_cast %444 : vector<1x2x32xf32> to vector<2x32xf32>
    %446 = vector.shape_cast %439 : vector<2x32xf32> to vector<1x2x32xf32>
    tpu.vector_store %arg15[%443, %c0_104, %c0_105], %446 {strides = array<i32>} : memref<8x2x64xf32, #tpu.memory_space<vmem>>, vector<1x2x32xf32>,
    %447 = arith.index_cast %397 : i32 to index
    %c0_106 = arith.constant 0 : index
    %c32_107 = arith.constant 32 : index
    %448 = vector.load %arg15[%447, %c0_106, %c32_107] : memref<8x2x64xf32, #tpu.memory_space<vmem>>, vector<1x2x32xf32>
    %449 = vector.shape_cast %448 : vector<1x2x32xf32> to vector<2x32xf32>
    %450 = vector.shape_cast %442 : vector<2x32xf32> to vector<1x2x32xf32>
    tpu.vector_store %arg15[%447, %c0_106, %c32_107], %450 {strides = array<i32>} : memref<8x2x64xf32, #tpu.memory_space<vmem>>, vector<1x2x32xf32>,
    %451 = tpu.concatenate %439, %442 in 1 : vector<2x32xf32>, vector<2x32xf32> -> vector<2x64xf32>
    %c8_i32 = arith.constant 8 : i32
    %c0_108 = arith.constant 0 : index
    %c0_109 = arith.constant 0 : index
    %c0_110 = arith.constant 0 : index
    %452 = vector.load %arg15[%c0_108, %c0_109, %c0_110] : memref<8x2x64xf32, #tpu.memory_space<vmem>>, vector<8x2x64xf32>
    %c0_111 = arith.constant 0 : index
    %c0_112 = arith.constant 0 : index
    %453 = vector.load %arg6[%c0_111, %c0_112] : memref<1x64xf32, #tpu.memory_space<vmem>>, vector<1x64xf32>
    %c0_113 = arith.constant 0 : index
    %c0_114 = arith.constant 0 : index
    %454 = vector.load %arg7[%c0_113, %c0_114] : memref<1x64xf32, #tpu.memory_space<vmem>>, vector<1x64xf32>
    %cst_115 = arith.constant dense<0.000000e+00> : vector<8x2xf32>
    %455 = vector.multi_reduction <add>, %452, %cst_115 [2] : vector<8x2x64xf32> to vector<8x2xf32>
    %456 = vector.shape_cast %455 : vector<8x2xf32> to vector<8x2x1xf32>
    %cst_116 = arith.constant 6.400000e+01 : f32
    %457 = vector.broadcast %cst_116 : f32 to vector<8x2x1xf32>
    %458 = arith.divf %456, %457 : vector<8x2x1xf32>
    %459 = vector.broadcast %458 : vector<8x2x1xf32> to vector<8x2x64xf32>
    %460 = arith.subf %452, %459 : vector<8x2x64xf32>
    %461 = arith.mulf %460, %460 : vector<8x2x64xf32>
    %cst_117 = arith.constant dense<0.000000e+00> : vector<8x2xf32>
    %462 = vector.multi_reduction <add>, %461, %cst_117 [2] : vector<8x2x64xf32> to vector<8x2xf32>
    %463 = vector.shape_cast %462 : vector<8x2xf32> to vector<8x2x1xf32>
    %cst_118 = arith.constant 6.400000e+01 : f32
    %464 = vector.broadcast %cst_118 : f32 to vector<8x2x1xf32>
    %465 = arith.divf %463, %464 : vector<8x2x1xf32>
    %466 = vector.broadcast %458 : vector<8x2x1xf32> to vector<8x2x64xf32>
    %467 = arith.subf %452, %466 : vector<8x2x64xf32>
    %cst_119 = arith.constant 9.99999974E-6 : f32
    %468 = vector.broadcast %cst_119 : f32 to vector<8x2x1xf32>
    %469 = arith.addf %465, %468 : vector<8x2x1xf32>
    %470 = math.rsqrt %469 : vector<8x2x1xf32>
    %471 = vector.broadcast %470 : vector<8x2x1xf32> to vector<8x2x64xf32>
    %472 = arith.mulf %467, %471 : vector<8x2x64xf32>
    %473 = vector.shape_cast %453 : vector<1x64xf32> to vector<1x1x64xf32>
    %474 = vector.broadcast %473 : vector<1x1x64xf32> to vector<8x2x64xf32>
    %475 = arith.mulf %472, %474 : vector<8x2x64xf32>
    %476 = vector.shape_cast %454 : vector<1x64xf32> to vector<1x1x64xf32>
    %477 = vector.broadcast %476 : vector<1x1x64xf32> to vector<8x2x64xf32>
    %478 = arith.addf %475, %477 : vector<8x2x64xf32>
    %c0_120 = arith.constant 0 : index
    %c0_121 = arith.constant 0 : index
    %479 = vector.load %arg8[%c0_120, %c0_121] : memref<1x64xf32, #tpu.memory_space<vmem>>, vector<1x64xf32>
    %480 = vector.shape_cast %479 : vector<1x64xf32> to vector<1x1x64xf32>
    %481 = vector.broadcast %480 : vector<1x1x64xf32> to vector<8x2x64xf32>
    %482 = arith.mulf %478, %481 : vector<8x2x64xf32>
    %cst_122 = arith.constant dense<0.000000e+00> : vector<8x2xf32>
    %483 = vector.multi_reduction <add>, %482, %cst_122 [2] : vector<8x2x64xf32> to vector<8x2xf32>
    %484 = tpu.transpose %483, [1, 0] : vector<8x2xf32> -> vector<2x8xf32>
    %c0_123 = arith.constant 0 : index
    %c0_124 = arith.constant 0 : index
    %485 = vector.load %arg9[%c0_123, %c0_124] : memref<1x1xf32, #tpu.memory_space<vmem>>, vector<1x1xf32>
    %486 = vector.broadcast %485 : vector<1x1xf32> to vector<2x8xf32>
    %487 = arith.addf %484, %486 : vector<2x8xf32>
    %c0_125 = arith.constant 0 : index
    %c0_126 = arith.constant 0 : index
    %488 = vector.load %arg2[%c0_125, %c0_126] : memref<2x8xi32, #tpu.memory_space<vmem>>, vector<2x8xi32>
    %c0_i32_127 = arith.constant 0 : i32
    %489 = vector.broadcast %c0_i32_127 : i32 to vector<2x8xi32>
    %490 = arith.cmpi ne, %488, %489 : vector<2x8xi32>
    %cst_128 = arith.constant 0xFF800000 : f32
    %491 = vector.broadcast %cst_128 : f32 to vector<2x8xf32>
    %492 = arith.select %490, %487, %491 : vector<2x8xi1>, vector<2x8xf32>
    %cst_129 = arith.constant dense<0xFF800000> : vector<2xf32>
    %493 = vector.multi_reduction <maximumf>, %492, %cst_129 [1] : vector<2x8xf32> to vector<2xf32>
    %494 = vector.shape_cast %493 : vector<2xf32> to vector<2x1xf32>
    %495 = vector.broadcast %494 : vector<2x1xf32> to vector<2x8xf32>
    %496 = arith.subf %492, %495 : vector<2x8xf32>
    %497 = math.exp %496 : vector<2x8xf32>
    %cst_130 = arith.constant dense<0.000000e+00> : vector<2xf32>
    %498 = vector.multi_reduction <add>, %497, %cst_130 [1] : vector<2x8xf32> to vector<2xf32>
    %499 = vector.shape_cast %498 : vector<2xf32> to vector<2x1xf32>
    %500 = vector.broadcast %499 : vector<2x1xf32> to vector<2x8xf32>
    %501 = arith.divf %497, %500 : vector<2x8xf32>
    %c0_131 = arith.constant 0 : index
    %c0_132 = arith.constant 0 : index
    %502 = vector.load %arg13[%c0_131, %c0_132] : memref<2x8xf32, #tpu.memory_space<vmem>>, vector<2x8xf32>
    tpu.vector_store %arg13[%c0_131, %c0_132], %501 {strides = array<i32>} : memref<2x8xf32, #tpu.memory_space<vmem>>, vector<2x8xf32>,
    %503 = tpu.transpose %501, [1, 0] : vector<2x8xf32> -> vector<8x2xf32>
    %504 = vector.shape_cast %503 : vector<8x2xf32> to vector<8x2x1xf32>
    %505 = vector.broadcast %504 : vector<8x2x1xf32> to vector<8x2x64xf32>
    %506 = arith.mulf %505, %478 : vector<8x2x64xf32>
    %cst_133 = arith.constant dense<0.000000e+00> : vector<2x64xf32>
    %507 = vector.multi_reduction <add>, %506, %cst_133 [0] : vector<8x2x64xf32> to vector<2x64xf32>
    %cst_134 = arith.constant dense<0.000000e+00> : vector<2xf32>
    %508 = vector.multi_reduction <add>, %507, %cst_134 [1] : vector<2x64xf32> to vector<2xf32>
    %509 = vector.shape_cast %508 : vector<2xf32> to vector<2x1xf32>
    %cst_135 = arith.constant 6.400000e+01 : f32
    %510 = vector.broadcast %cst_135 : f32 to vector<2x1xf32>
    %511 = arith.divf %509, %510 : vector<2x1xf32>
    %512 = vector.broadcast %511 : vector<2x1xf32> to vector<2x64xf32>
    %513 = arith.subf %507, %512 : vector<2x64xf32>
    %514 = arith.mulf %513, %513 : vector<2x64xf32>
    %cst_136 = arith.constant dense<0.000000e+00> : vector<2xf32>
    %515 = vector.multi_reduction <add>, %514, %cst_136 [1] : vector<2x64xf32> to vector<2xf32>
    %516 = vector.shape_cast %515 : vector<2xf32> to vector<2x1xf32>
    %cst_137 = arith.constant 6.400000e+01 : f32
    %517 = vector.broadcast %cst_137 : f32 to vector<2x1xf32>
    %518 = arith.divf %516, %517 : vector<2x1xf32>
    %519 = vector.broadcast %511 : vector<2x1xf32> to vector<2x64xf32>
    %520 = arith.subf %507, %519 : vector<2x64xf32>
    %cst_138 = arith.constant 9.99999974E-6 : f32
    %521 = vector.broadcast %cst_138 : f32 to vector<2x1xf32>
    %522 = arith.addf %518, %521 : vector<2x1xf32>
    %523 = math.rsqrt %522 : vector<2x1xf32>
    %524 = vector.broadcast %523 : vector<2x1xf32> to vector<2x64xf32>
    %525 = arith.mulf %520, %524 : vector<2x64xf32>
    %526 = vector.broadcast %453 : vector<1x64xf32> to vector<2x64xf32>
    %527 = arith.mulf %525, %526 : vector<2x64xf32>
    %528 = vector.broadcast %454 : vector<1x64xf32> to vector<2x64xf32>
    %529 = arith.addf %527, %528 : vector<2x64xf32>
    %c0_139 = arith.constant 0 : index
    %c0_140 = arith.constant 0 : index
    %530 = vector.load %arg10[%c0_139, %c0_140] : memref<64x4xf32, #tpu.memory_space<vmem>>, vector<64x4xf32>
    %cst_141 = arith.constant dense<0.000000e+00> : vector<2x4xf32>
    %531 = tpu.matmul %529, %530, %cst_141 {dimension_numbers = #tpu.dot_dimension_numbers<[1], [0], [0], [1], [0, 0, 1, 1], [], []>} : vector<2x64xf32>, vector<64x4xf32>, vector<2x4xf32> -> vector<2x4xf32>
    %c0_142 = arith.constant 0 : index
    %c0_143 = arith.constant 0 : index
    %532 = vector.load %arg11[%c0_142, %c0_143] : memref<1x4xf32, #tpu.memory_space<vmem>>, vector<1x4xf32>
    %533 = vector.broadcast %532 : vector<1x4xf32> to vector<2x4xf32>
    %534 = arith.addf %531, %533 : vector<2x4xf32>
    %c0_144 = arith.constant 0 : index
    %c0_145 = arith.constant 0 : index
    %535 = vector.load %arg12[%c0_144, %c0_145] : memref<2x4xf32, #tpu.memory_space<vmem>>, vector<2x4xf32>
    tpu.vector_store %arg12[%c0_144, %c0_145], %534 {strides = array<i32>} : memref<2x4xf32, #tpu.memory_space<vmem>>, vector<2x4xf32>,
    return
  }
  func.func @transform_0(%arg0: i32) -> (i32, i32, i32) {
    %c0_i32 = arith.constant 0 : i32
    %c0_i32_0 = arith.constant 0 : i32
    %c0_i32_1 = arith.constant 0 : i32
    return %c0_i32, %arg0, %c0_i32_0 : i32, i32, i32
  }
  func.func @transform_1(%arg0: i32) -> (i32, i32) {
    %c0_i32 = arith.constant 0 : i32
    %c0_i32_0 = arith.constant 0 : i32
    return %arg0, %c0_i32 : i32, i32
  }
  func.func @transform_2(%arg0: i32) -> (i32, i32) {
    %c0_i32 = arith.constant 0 : i32
    %c0_i32_0 = arith.constant 0 : i32
    %c0_i32_1 = arith.constant 0 : i32
    return %c0_i32, %c0_i32_0 : i32, i32
  }
  func.func @transform_3(%arg0: i32) -> (i32, i32) {
    %c0_i32 = arith.constant 0 : i32
    %c0_i32_0 = arith.constant 0 : i32
    %c0_i32_1 = arith.constant 0 : i32
    return %c0_i32, %c0_i32_0 : i32, i32
  }
  func.func @transform_4(%arg0: i32) -> (i32, i32) {
    %c0_i32 = arith.constant 0 : i32
    %c0_i32_0 = arith.constant 0 : i32
    %c0_i32_1 = arith.constant 0 : i32
    return %c0_i32, %c0_i32_0 : i32, i32
  }
  func.func @transform_5(%arg0: i32) -> (i32, i32) {
    %c0_i32 = arith.constant 0 : i32
    %c0_i32_0 = arith.constant 0 : i32
    %c0_i32_1 = arith.constant 0 : i32
    return %c0_i32, %c0_i32_0 : i32, i32
  }
  func.func @transform_6(%arg0: i32) -> (i32, i32) {
    %c0_i32 = arith.constant 0 : i32
    %c0_i32_0 = arith.constant 0 : i32
    %c0_i32_1 = arith.constant 0 : i32
    return %c0_i32, %c0_i32_0 : i32, i32
  }
  func.func @transform_7(%arg0: i32) -> (i32, i32) {
    %c0_i32 = arith.constant 0 : i32
    %c0_i32_0 = arith.constant 0 : i32
    %c0_i32_1 = arith.constant 0 : i32
    return %c0_i32, %c0_i32_0 : i32, i32
  }
  func.func @transform_8(%arg0: i32) -> (i32, i32) {
    %c0_i32 = arith.constant 0 : i32
    %c0_i32_0 = arith.constant 0 : i32
    %c0_i32_1 = arith.constant 0 : i32
    return %c0_i32, %c0_i32_0 : i32, i32
  }
  func.func @transform_9(%arg0: i32) -> (i32, i32) {
    %c0_i32 = arith.constant 0 : i32
    %c0_i32_0 = arith.constant 0 : i32
    %c0_i32_1 = arith.constant 0 : i32
    return %c0_i32, %c0_i32_0 : i32, i32
  }
  func.func @transform_10(%arg0: i32) -> (i32, i32) {
    %c0_i32 = arith.constant 0 : i32
    %c0_i32_0 = arith.constant 0 : i32
    %c0_i32_1 = arith.constant 0 : i32
    return %c0_i32, %c0_i32_0 : i32, i32
  }
  func.func @transform_11(%arg0: i32) -> (i32, i32) {
    %c0_i32 = arith.constant 0 : i32
    %c0_i32_0 = arith.constant 0 : i32
    return %arg0, %c0_i32 : i32, i32
  }
  func.func @transform_12(%arg0: i32) -> (i32, i32) {
    %c0_i32 = arith.constant 0 : i32
    %c0_i32_0 = arith.constant 0 : i32
    return %arg0, %c0_i32 : i32, i32
  }
}

</mosaic_0001>

<llo_original>
// kernel: tpu_custom_call.1
$region0: #{tpu_custom_call.1}
  #allocation0 [shape = 'u32[]', space=smem, size = 0x4, offset = 0x4, fixed_abs, tag = 'smem constant byte address 0x4 - core index']
  #allocation1 [shape = 'u32[144,128]{1,0:T(1,128)}', space=vmem, size = 0x12000, scoped, tag = 'internal scratch']
  #allocation2 [shape = 'f32[8,2,256]{2,1,0:T(2,128)}', space=vmem, size = 0x4000, scoped, tag = 'scratch operand']
  #allocation3 [shape = 'f32[8,2,64]{2,1,0:T(2,128)}', space=vmem, size = 0x2000, scoped, tag = 'scratch operand']
  #allocation4 [shape = 'f32[1,1]{1,0:T(1,128)S(1)}', space=vmem, size = 0x200, scoped, tag = 'scoped memory for tpu_custom_call.1']
  %s0 = inlined_call_operand.vmem [shape: f32[8,2,16], index: 0, kind: input, shape index: {}]
  %s1 = inlined_call_operand.vmem [shape: s32[2,8], index: 1, kind: input, shape index: {}]
  %s2 = inlined_call_operand.vmem [shape: f32[16,256], index: 2, kind: input, shape index: {}]
  %s3 = inlined_call_operand.vmem [shape: f32[1,256], index: 3, kind: input, shape index: {}]
  %s4 = inlined_call_operand.hbm [shape: f32[64,256], index: 4, kind: input, shape index: {}]
  %s5 = inlined_call_operand.vmem [shape: f32[1,64], index: 5, kind: input, shape index: {}]
  %s6 = inlined_call_operand.vmem [shape: f32[1,64], index: 6, kind: input, shape index: {}]
  %s7 = inlined_call_operand.vmem [shape: f32[1,64], index: 7, kind: input, shape index: {}]
  %s8 = inlined_call_operand.<no memory space> [shape: f32[1,1], index: 8, kind: input, shape index: {}]
  %s9 = inlined_call_operand.vmem [shape: f32[64,4], index: 9, kind: input, shape index: {}]
  %s10 = inlined_call_operand.vmem [shape: f32[1,4], index: 10, kind: input, shape index: {}]
  %s11 = inlined_call_operand.hbm [shape: f32[2,4], index: 11, kind: output, shape index: {0}]
  %s12 = inlined_call_operand.hbm [shape: f32[2,8], index: 12, kind: output, shape index: {1}]
  %13 = xla_tuple %s11, %s12
  %s14 = sld [smem:[#allocation0]]
  $region66: #{tpu_custom_call.1} parent=0
    _
  %s16 = ssub.s32 1, %s14
  %s17 = scalar_select 0, %s16, %s14
  %v18 = vstv %s8
  %19 = vst [vmem:[#allocation4] sm:$0x1] %v18
  $region1: #{tpu_custom_call.1} parent=0
    #allocation5 [shape = 'u8[65536]{0}', space=vmem, size = 0x10000, scoped, tag = 'input window, operand 4, single buffered']
    #allocation6 [shape = 's32[1]{0}', space=sflag, size = 0x4, scoped, tag = 'scoped memory for tpu_custom_call.1']
    #allocation7 [shape = 's32[1]{0}', space=sflag, size = 0x4, scoped, tag = 'scoped memory for tpu_custom_call.1']
    #allocation8 [shape = 'u8[1024]{0}', space=vmem, size = 0x400, scoped, tag = 'output window, operand 0, single buffered']
    #allocation9 [shape = 'u8[1024]{0}', space=vmem, size = 0x400, scoped, tag = 'output window, operand 1, single buffered']
    #allocation10 [shape = 's32[1]{0}', space=sflag, size = 0x4, scoped, tag = 'scoped memory for tpu_custom_call.1']
    %20 = vsyncpa [#allocation6], 0
    %21 = vsyncpa [#allocation7], 0
    %22 = vsyncpa [#allocation10], 0
    // Predicated region
    $region2: #{tpu_custom_call.1} parent=1 // pred_check
      _
    $region3: #{tpu_custom_call.1} parent=1 // pred_check_branch
      %24 = sbr.rel (0) target = $region5
    $region4: #{tpu_custom_call.1} parent=1 // pred_region
      _
    $region5: #{tpu_custom_call.1} parent=1 // pred_fallthru
      _
    // Predicated region
    $region6: #{tpu_custom_call.1} parent=1 // pred_check
      _
    $region7: #{tpu_custom_call.1} parent=1 // pred_check_branch
      %26 = sbr.rel (0) target = $region9
    $region8: #{tpu_custom_call.1} parent=1 // pred_region
      _
    $region9: #{tpu_custom_call.1} parent=1 // pred_fallthru
      _
    // Predicated region
    $region10: #{tpu_custom_call.1} parent=1 // pred_check
      _
    $region11: #{tpu_custom_call.1} parent=1 // pred_check_branch
      %28 = sbr.rel (0) target = $region13
    $region12: #{tpu_custom_call.1} parent=1 // pred_region
      _
    $region13: #{tpu_custom_call.1} parent=1 // pred_fallthru
      _
    // Predicated region
    $region14: #{tpu_custom_call.1} parent=1 // pred_check
      _
    $region15: #{tpu_custom_call.1} parent=1 // pred_check_branch
      %30 = sbr.rel (0) target = $region17
    $region16: #{tpu_custom_call.1} parent=1 // pred_region
      _
    $region17: #{tpu_custom_call.1} parent=1 // pred_fallthru
      _
    // Predicated region
    $region18: #{tpu_custom_call.1} parent=1 // pred_check
      _
    $region19: #{tpu_custom_call.1} parent=1 // pred_check_branch
      %32 = sbr.rel (0) target = $region21
    $region20: #{tpu_custom_call.1} parent=1 // pred_region
      %s34 = ssub.s32 2048, 2048
      %35 = vsyncadd [#allocation6], %s34
      %s36 = sshll.u32 [#allocation5], 4
      %s37 = int_to_ptr.vmem [resolvable:$true] %s36
      %42 = dma.hbm_to_vmem [thread:$0]  %s4, 2048, %s37, [#allocation6], 256, 256, 16
    $region21: #{tpu_custom_call.1} parent=1 // pred_fallthru
      _
    // Predicated region
    $region22: #{tpu_custom_call.1} parent=1 // pred_check
      _
    $region23: #{tpu_custom_call.1} parent=1 // pred_check_branch
      %44 = sbr.rel (0) target = $region25
    $region24: #{tpu_custom_call.1} parent=1 // pred_region
      _
    $region25: #{tpu_custom_call.1} parent=1 // pred_fallthru
      _
    // Predicated region
    $region26: #{tpu_custom_call.1} parent=1 // pred_check
      _
    $region27: #{tpu_custom_call.1} parent=1 // pred_check_branch
      %46 = sbr.rel (0) target = $region29
    $region28: #{tpu_custom_call.1} parent=1 // pred_region
      _
    $region29: #{tpu_custom_call.1} parent=1 // pred_fallthru
      _
    // Predicated region
    $region30: #{tpu_custom_call.1} parent=1 // pred_check
      _
    $region31: #{tpu_custom_call.1} parent=1 // pred_check_branch
      %48 = sbr.rel (0) target = $region33
    $region32: #{tpu_custom_call.1} parent=1 // pred_region
      _
    $region33: #{tpu_custom_call.1} parent=1 // pred_fallthru
      _
    // Predicated region
    $region34: #{tpu_custom_call.1} parent=1 // pred_check
      _
    $region35: #{tpu_custom_call.1} parent=1 // pred_check_branch
      %50 = sbr.rel (0) target = $region37
    $region36: #{tpu_custom_call.1} parent=1 // pred_region
      _
    $region37: #{tpu_custom_call.1} parent=1 // pred_fallthru
      _
    // Predicated region
    $region38: #{tpu_custom_call.1} parent=1 // pred_check
      _
    $region39: #{tpu_custom_call.1} parent=1 // pred_check_branch
      %52 = sbr.rel (0) target = $region41
    $region40: #{tpu_custom_call.1} parent=1 // pred_region
      _
    $region41: #{tpu_custom_call.1} parent=1 // pred_fallthru
      _
    // Predicated region
    $region42: #{tpu_custom_call.1} parent=1 // pred_check
      _
    $region43: #{tpu_custom_call.1} parent=1 // pred_check_branch
      %54 = sbr.rel (0) target = $region45
    $region44: #{tpu_custom_call.1} parent=1 // pred_region
      _
    $region45: #{tpu_custom_call.1} parent=1 // pred_fallthru
      _
    // Predicated region
    $region46: #{tpu_custom_call.1} parent=1 // pred_check
      _
    $region47: #{tpu_custom_call.1} parent=1 // pred_check_branch
      %56 = sbr.rel (0) target = $region49
    $region48: #{tpu_custom_call.1} parent=1 // pred_region
      %57 = dma.done [#allocation6], 2048
    $region49: #{tpu_custom_call.1} parent=1 // pred_fallthru
      _
    %v58 = vld [vmem:[%s0] sm:$0x3]
    %v59 = vld [vmem:[%s0 + $0x2] sm:$0x3]
    %v60 = vld [vmem:[%s0 + $0x4] sm:$0x3]
    %v61 = vld [vmem:[%s0 + $0x6] sm:$0x3]
    %v62 = vld [vmem:[%s0 + $0x8] sm:$0x3]
    %v63 = vld [vmem:[%s0 + $0xa] sm:$0x3]
    %v64 = vld [vmem:[%s0 + $0xc] sm:$0x3]
    %v65 = vld [vmem:[%s0 + $0xe] sm:$0x3]
    %v66 = vld [vmem:[%s2] sm:$0xff]
    %v67 = vld [vmem:[%s2 + $0x8] sm:$0xff]
    %v68 = vld [vmem:[%s2 + $0x10] sm:$0xff]
    %v69 = vld [vmem:[%s2 + $0x18] sm:$0xff]
    %v70 = vld [vmem:[%s3] sm:$0x3]
    %v72 = vlaneseq
    %v73 = vshrl.u32 %v72, 7
    %v74 = vsub.s32 0, %v73
    %v75 = vrot.slane %v70, %v74
    %v76 = vlaneseq
    %v77 = vshrl.u32 %v76, 7
    %v78 = vsub.s32 1, %v77
    %v79 = vrot.slane %v70, %v78
    %v90 = vcombine.low %v58, %v59
    %v91 = vcombine.low %v60, %v61
    %v93 = vunpack.c.l.s4 1983009808
    %v94 = vunpack.c.0.s8 %v93
    %v95 = vlaneseq
    %v96 = vshrl.u32 %v95, 7
    %v97 = vsub.s32 %v94, %v96
    %v98 = vrot.slane %v90, %v97
    %v100 = vunpack.c.l.s4 1983009808
    %v101 = vunpack.c.0.s8 %v100
    %v102 = vlaneseq
    %v103 = vshrl.u32 %v102, 7
    %v104 = vsub.s32 %v101, %v103
    %v105 = vrot.slane %v91, %v104
    %v106 = vcombine.low %v98, %v105
    %v107 = vcombine.low %v62, %v63
    %v108 = vcombine.low %v64, %v65
    %v110 = vunpack.c.l.s4 1983009808
    %v111 = vunpack.c.0.s8 %v110
    %v112 = vlaneseq
    %v113 = vshrl.u32 %v112, 7
    %v114 = vsub.s32 %v111, %v113
    %v115 = vrot.slane %v107, %v114
    %v117 = vunpack.c.l.s4 1983009808
    %v118 = vunpack.c.0.s8 %v117
    %v119 = vlaneseq
    %v120 = vshrl.u32 %v119, 7
    %v121 = vsub.s32 %v118, %v120
    %v122 = vrot.slane %v108, %v121
    %v123 = vcombine.low %v115, %v122
    %vm124 = vcmask 130048
    %v125 = vsel %vm124, %v106, 0
    %v127 = vsel %vm124, %v123, 0
    %129 = vmatprep.subr.mxu0 %v67
    %130 = vmatpush1.msra.mxu0 %v66
    %131 = vmatprep.subr.mxu0 %v69
    %132 = vmatpush1.msra.mxu0 %v68
    %133 = vmatprep.subr.mxu0 0.0
    %134 = vmatpush1.msra.mxu0 0.0
    %135 = vmatprep.subr.mxu0 0.0
    %136 = vmatpush1.msra.mxu0 0.0
    %137 = vmatprep.subr.mxu0 0.0
    %138 = vmatpush1.msra.mxu0 0.0
    %139 = vmatprep.subr.mxu0 0.0
    %140 = vmatpush1.msra.mxu0 0.0
    %141 = vmatprep.subr.mxu0 0.0
    %142 = vmatpush1.msra.mxu0 0.0
    %143 = vmatprep.subr.mxu0 0.0
    %144 = vmatpush1.msra.mxu0 0.0
    %145 = vmatprep.subr.mxu0 0.0
    %146 = vmatpush1.msra.mxu0 0.0
    %147 = vmatprep.subr.mxu0 0.0
    %148 = vmatpush1.msra.mxu0 0.0
    %149 = vmatprep.subr.mxu0 0.0
    %150 = vmatpush1.msra.mxu0 0.0
    %151 = vmatprep.subr.mxu0 0.0
    %152 = vmatpush1.msra.mxu0 0.0
    %153 = vmatprep.subr.mxu0 0.0
    %154 = vmatpush1.msra.mxu0 0.0
    %155 = vmatprep.subr.mxu0 0.0
    %156 = vmatpush1.msra.mxu0 0.0
    %157 = vmatprep.subr.mxu0 0.0
    %158 = vmatpush1.msra.mxu0 0.0
    %159 = vmatprep.subr.mxu0 0.0
    %160 = vmatpush1.msra.mxu0 0.0
    %161 = vmatprep.subr.mxu0 0.0
    %162 = vmatpush1.msra.mxu0 0.0
    %163 = vmatprep.subr.mxu0 0.0
    %164 = vmatpush1.msra.mxu0 0.0
    %165 = vmatprep.subr.mxu0 0.0
    %166 = vmatpush1.msra.mxu0 0.0
    %167 = vmatprep.subr.mxu0 0.0
    %168 = vmatpush1.msra.mxu0 0.0
    %169 = vmatprep.subr.mxu0 0.0
    %170 = vmatpush1.msra.mxu0 0.0
    %171 = vmatprep.subr.mxu0 0.0
    %172 = vmatpush1.msra.mxu0 0.0
    %173 = vmatprep.subr.mxu0 0.0
    %174 = vmatpush1.msra.mxu0 0.0
    %175 = vmatprep.subr.mxu0 0.0
    %176 = vmatpush1.msra.mxu0 0.0
    %177 = vmatprep.subr.mxu0 0.0
    %178 = vmatpush1.msra.mxu0 0.0
    %179 = vmatprep.subr.mxu0 0.0
    %180 = vmatpush1.msra.mxu0 0.0
    %181 = vmatprep.subr.mxu0 0.0
    %182 = vmatpush1.msra.mxu0 0.0
    %183 = vmatprep.subr.mxu0 0.0
    %184 = vmatpush1.msra.mxu0 0.0
    %185 = vmatprep.subr.mxu0 0.0
    %186 = vmatpush1.msra.mxu0 0.0
    %187 = vmatprep.subr.mxu0 0.0
    %188 = vmatpush1.msra.mxu0 0.0
    %189 = vmatprep.subr.mxu0 0.0
    %190 = vmatpush1.msra.mxu0 0.0
    %191 = vmatprep.subr.mxu0 0.0
    %192 = vmatpush1.msra.mxu0 0.0
    %193 = vmatprep.mubr.f32.mxu0 0.0
    %194 = vmatmul.mubr.f32.gmra.mrb[0].mxu0 %v125
    %v195 = vpop.f32.mrb[0].mxu0
    %v196 = vadd.f32 %v75, %v195
    %v197 = vpop.f32.mrb[0].mxu0
    %v198 = vadd.f32 %v79, %v197
    %199 = vmatprep.mubr.f32.mxu0 0.0
    %200 = vmatmul.mubr.f32.gmra.mrb[0].mxu0 %v127
    %v201 = vpop.f32.mrb[0].mxu0
    %v202 = vadd.f32 %v75, %v201
    %v203 = vpop.f32.mrb[0].mxu0
    %v204 = vadd.f32 %v79, %v203
    %205 = vdwg.mxu0
    %v210 = vcombine.low %v196, %v198
    %v211 = vcombine.high %v196, %v198
    %v213 = vunpack.c.l.s4 1983009808
    %v214 = vunpack.c.0.s8 %v213
    %v215 = vlaneseq
    %v216 = vshrl.u32 %v215, 7
    %v217 = vsub.s32 %v214, %v216
    %v218 = vrot.slane %v210, %v217
    %v220 = vunpack.c.l.s4 1983009808
    %v221 = vunpack.c.0.s8 %v220
    %v222 = vlaneseq
    %v223 = vshrl.u32 %v222, 7
    %v224 = vsub.s32 %v221, %v223
    %v225 = vrot.slane %v211, %v224
    %v226 = vcombine.high %v218, %v218
    %v227 = vcombine.high %v225, %v225
    %v228 = vcombine.low %v202, %v204
    %v229 = vcombine.high %v202, %v204
    %v231 = vunpack.c.l.s4 1983009808
    %v232 = vunpack.c.0.s8 %v231
    %v233 = vlaneseq
    %v234 = vshrl.u32 %v233, 7
    %v235 = vsub.s32 %v232, %v234
    %v236 = vrot.slane %v228, %v235
    %v238 = vunpack.c.l.s4 1983009808
    %v239 = vunpack.c.0.s8 %v238
    %v240 = vlaneseq
    %v241 = vshrl.u32 %v240, 7
    %v242 = vsub.s32 %v239, %v241
    %v243 = vrot.slane %v229, %v242
    %v244 = vcombine.high %v236, %v236
    %v245 = vcombine.high %v243, %v243
    %254 = vst [vmem:[#allocation2] sm:$0xf] %v218
    %255 = vst [vmem:[#allocation2 + $0x4] sm:$0xf] %v226
    %256 = vst [vmem:[#allocation2 + $0x8] sm:$0xf] %v225
    %257 = vst [vmem:[#allocation2 + $0xc] sm:$0xf] %v227
    %258 = vst [vmem:[#allocation2 + $0x10] sm:$0xf] %v236
    %259 = vst [vmem:[#allocation2 + $0x14] sm:$0xf] %v244
    %260 = vst [vmem:[#allocation2 + $0x18] sm:$0xf] %v243
    %261 = vst [vmem:[#allocation2 + $0x1c] sm:$0xf] %v245
    %v262 = vld [vmem:[#allocation5] sm:$0xff]
    %v263 = vld [vmem:[#allocation5 + $0x8] sm:$0xff]
    %v264 = vld [vmem:[#allocation5 + $0x10] sm:$0xff]
    %v265 = vld [vmem:[#allocation5 + $0x18] sm:$0xff]
    %v266 = vld [vmem:[#allocation5 + $0x20] sm:$0xff]
    %v267 = vld [vmem:[#allocation5 + $0x28] sm:$0xff]
    %v268 = vld [vmem:[#allocation5 + $0x30] sm:$0xff]
    %v269 = vld [vmem:[#allocation5 + $0x38] sm:$0xff]
    %v270 = vld [vmem:[#allocation5 + $0x40] sm:$0xff]
    %v271 = vld [vmem:[#allocation5 + $0x48] sm:$0xff]
    %v272 = vld [vmem:[#allocation5 + $0x50] sm:$0xff]
    %v273 = vld [vmem:[#allocation5 + $0x58] sm:$0xff]
    %v274 = vld [vmem:[#allocation5 + $0x60] sm:$0xff]
    %v275 = vld [vmem:[#allocation5 + $0x68] sm:$0xff]
    %v276 = vld [vmem:[#allocation5 + $0x70] sm:$0xff]
    %v277 = vld [vmem:[#allocation5 + $0x78] sm:$0xff]
    %vm278 = vcmask 523264
    %v280 = vsel %vm278, 0.0, 0
    %282 = vmatprep.subr.mxu0 %v263
    %283 = vmatpush1.msra.mxu0 %v262
    %284 = vmatprep.subr.mxu0 %v265
    %285 = vmatpush1.msra.mxu0 %v264
    %286 = vmatprep.subr.mxu0 %v267
    %287 = vmatpush1.msra.mxu0 %v266
    %288 = vmatprep.subr.mxu0 %v269
    %289 = vmatpush1.msra.mxu0 %v268
    %290 = vmatprep.subr.mxu0 %v271
    %291 = vmatpush1.msra.mxu0 %v270
    %292 = vmatprep.subr.mxu0 %v273
    %293 = vmatpush1.msra.mxu0 %v272
    %294 = vmatprep.subr.mxu0 %v275
    %295 = vmatpush1.msra.mxu0 %v274
    %296 = vmatprep.subr.mxu0 %v277
    %297 = vmatpush1.msra.mxu0 %v276
    %298 = vmatprep.subr.mxu0 0.0
    %299 = vmatpush1.msra.mxu0 0.0
    %300 = vmatprep.subr.mxu0 0.0
    %301 = vmatpush1.msra.mxu0 0.0
    %302 = vmatprep.subr.mxu0 0.0
    %303 = vmatpush1.msra.mxu0 0.0
    %304 = vmatprep.subr.mxu0 0.0
    %305 = vmatpush1.msra.mxu0 0.0
    %306 = vmatprep.subr.mxu0 0.0
    %307 = vmatpush1.msra.mxu0 0.0
    %308 = vmatprep.subr.mxu0 0.0
    %309 = vmatpush1.msra.mxu0 0.0
    %310 = vmatprep.subr.mxu0 0.0
    %311 = vmatpush1.msra.mxu0 0.0
    %312 = vmatprep.subr.mxu0 0.0
    %313 = vmatpush1.msra.mxu0 0.0
    %314 = vmatprep.subr.mxu0 0.0
    %315 = vmatpush1.msra.mxu0 0.0
    %316 = vmatprep.subr.mxu0 0.0
    %317 = vmatpush1.msra.mxu0 0.0
    %318 = vmatprep.subr.mxu0 0.0
    %319 = vmatpush1.msra.mxu0 0.0
    %320 = vmatprep.subr.mxu0 0.0
    %321 = vmatpush1.msra.mxu0 0.0
    %322 = vmatprep.subr.mxu0 0.0
    %323 = vmatpush1.msra.mxu0 0.0
    %324 = vmatprep.subr.mxu0 0.0
    %325 = vmatpush1.msra.mxu0 0.0
    %326 = vmatprep.subr.mxu0 0.0
    %327 = vmatpush1.msra.mxu0 0.0
    %328 = vmatprep.subr.mxu0 0.0
    %329 = vmatpush1.msra.mxu0 0.0
    %330 = vmatprep.subr.mxu0 0.0
    %331 = vmatpush1.msra.mxu0 0.0
    %332 = vmatprep.subr.mxu0 0.0
    %333 = vmatpush1.msra.mxu0 0.0
    %334 = vmatprep.subr.mxu0 0.0
    %335 = vmatpush1.msra.mxu0 0.0
    %336 = vmatprep.subr.mxu0 0.0
    %337 = vmatpush1.msra.mxu0 0.0
    %338 = vmatprep.subr.mxu0 0.0
    %339 = vmatpush1.msra.mxu0 0.0
    %340 = vmatprep.subr.mxu0 0.0
    %341 = vmatpush1.msra.mxu0 0.0
    %342 = vmatprep.subr.mxu0 0.0
    %343 = vmatpush1.msra.mxu0 0.0
    %344 = vmatprep.subr.mxu0 0.0
    %345 = vmatpush1.msra.mxu0 0.0
    %346 = vmatprep.mubr.f32.mxu0 0.0
    %347 = vmatmul.mubr.f32.gmra.mrb[0].mxu0 %v280
    %v348 = vpop.f32.mrb[0].mxu0
    %v349 = vadd.f32 0.0, %v348
    %v350 = vpop.f32.mrb[0].mxu0
    %v351 = vadd.f32 0.0, %v350
    %352 = vdwg.mxu0
    %v353 = vld [vmem:[#allocation2] sm:$0xf]
    %s354 = scalar_lea.vmem [#allocation2], 28
    %v355 = vld [vmem:[%s354] sm:$0xf]
    %v356 = vadd.f32 %v353, %v349
    %v358 = vrot.slane %v355, 2
    %v360 = vadd.f32 %v358, %v351
    %v361 = vxor.u32 %v356, 2147483648
    %v362 = vmul.f32 %v361, 1.442695
    %v363 = vpow.pop %v362
    %v364 = vadd.f32 %v363, 1.0
    %v365 = vrcp.pop %v364
    %v366 = vmul.f32 1.0, %v365
    %v367 = vxor.u32 %v360, 2147483648
    %v368 = vmul.f32 %v367, 1.442695
    %v369 = vpow.pop %v368
    %v370 = vadd.f32 %v369, 1.0
    %v371 = vrcp.pop %v370
    %v372 = vmul.f32 1.0, %v371
    %v373 = vtanh.pop %v356
    %v374 = vtanh.pop %v360
    %v375 = vmul.f32 %v366, 0.0
    %377 = vrot.lane.b32.xlu0 %v373, 32
    %v378 = vpop.permute.xlu0 %377
    %v380 = vmul.f32 %v366, %v378
    %382 = vrot.lane.b32.xlu0 %v380, 32
    %v383 = vpop.permute.xlu0 %382
    %v385 = vadd.f32 %v375, %v383
    %v386 = vmul.f32 %v372, 0.0
    %388 = vrot.lane.b32.xlu0 %v374, 32
    %v389 = vpop.permute.xlu0 %388
    %v391 = vmul.f32 %v372, %v389
    %393 = vrot.lane.b32.xlu0 %v391, 32
    %v394 = vpop.permute.xlu0 %393
    %v396 = vadd.f32 %v386, %v394
    %v397 = vtanh.pop %v385
    %399 = vrot.lane.b32.xlu0 %v397, 32
    %v400 = vpop.permute.xlu0 %399
    %v402 = vmul.f32 %v366, %v400
    %v403 = vtanh.pop %v396
    %405 = vrot.lane.b32.xlu0 %v403, 32
    %v406 = vpop.permute.xlu0 %405
    %v408 = vmul.f32 %v372, %v406
    %v411 = vunpack.c.l.s4 1983009808
    %v412 = vunpack.c.0.s8 %v411
    %v413 = vlaneseq
    %v414 = vshrl.u32 %v413, 7
    %v415 = vsub.s32 %v412, %v414
    %v416 = vrot.slane %v402, %v415
    %417 = vrot.lane.b32.xlu0 %v416, 64
    %v418 = vpop.permute.xlu0 %417
    %vm420 = vcmask 254976
    %421 = vst.msk [vmem:[#allocation3] sm:$0x3] %vm420, %v418
    %v424 = vunpack.c.l.s4 1983009808
    %v425 = vunpack.c.0.s8 %v424
    %v426 = vlaneseq
    %v427 = vshrl.u32 %v426, 7
    %v428 = vsub.s32 %v425, %v427
    %v429 = vrot.slane %v408, %v428
    %430 = vrot.lane.b32.xlu0 %v429, 96
    %v431 = vpop.permute.xlu0 %430
    %s433 = scalar_lea.vmem [#allocation3], 14
    %vm434 = vcmask 517376
    %435 = vst.msk [vmem:[%s433] sm:$0x3] %vm434, %v431
    %vm436 = vcmask 261120
    %v437 = vsel %vm436, %v418, %v431
    %v439 = vsel %vm278, %v437, 0
    %441 = vmatprep.subr.mxu0 %v263
    %442 = vmatpush1.msra.mxu0 %v262
    %443 = vmatprep.subr.mxu0 %v265
    %444 = vmatpush1.msra.mxu0 %v264
    %445 = vmatprep.subr.mxu0 %v267
    %446 = vmatpush1.msra.mxu0 %v266
    %447 = vmatprep.subr.mxu0 %v269
    %448 = vmatpush1.msra.mxu0 %v268
    %449 = vmatprep.subr.mxu0 %v271
    %450 = vmatpush1.msra.mxu0 %v270
    %451 = vmatprep.subr.mxu0 %v273
    %452 = vmatpush1.msra.mxu0 %v272
    %453 = vmatprep.subr.mxu0 %v275
    %454 = vmatpush1.msra.mxu0 %v274
    %455 = vmatprep.subr.mxu0 %v277
    %456 = vmatpush1.msra.mxu0 %v276
    %457 = vmatprep.subr.mxu0 0.0
    %458 = vmatpush1.msra.mxu0 0.0
    %459 = vmatprep.subr.mxu0 0.0
    %460 = vmatpush1.msra.mxu0 0.0
    %461 = vmatprep.subr.mxu0 0.0
    %462 = vmatpush1.msra.mxu0 0.0
    %463 = vmatprep.subr.mxu0 0.0
    %464 = vmatpush1.msra.mxu0 0.0
    %465 = vmatprep.subr.mxu0 0.0
    %466 = vmatpush1.msra.mxu0 0.0
    %467 = vmatprep.subr.mxu0 0.0
    %468 = vmatpush1.msra.mxu0 0.0
    %469 = vmatprep.subr.mxu0 0.0
    %470 = vmatpush1.msra.mxu0 0.0
    %471 = vmatprep.subr.mxu0 0.0
    %472 = vmatpush1.msra.mxu0 0.0
    %473 = vmatprep.subr.mxu0 0.0
    %474 = vmatpush1.msra.mxu0 0.0
    %475 = vmatprep.subr.mxu0 0.0
    %476 = vmatpush1.msra.mxu0 0.0
    %477 = vmatprep.subr.mxu0 0.0
    %478 = vmatpush1.msra.mxu0 0.0
    %479 = vmatprep.subr.mxu0 0.0
    %480 = vmatpush1.msra.mxu0 0.0
    %481 = vmatprep.subr.mxu0 0.0
    %482 = vmatpush1.msra.mxu0 0.0
    %483 = vmatprep.subr.mxu0 0.0
    %484 = vmatpush1.msra.mxu0 0.0
    %485 = vmatprep.subr.mxu0 0.0
    %486 = vmatpush1.msra.mxu0 0.0
    %487 = vmatprep.subr.mxu0 0.0
    %488 = vmatpush1.msra.mxu0 0.0
    %489 = vmatprep.subr.mxu0 0.0
    %490 = vmatpush1.msra.mxu0 0.0
    %491 = vmatprep.subr.mxu0 0.0
    %492 = vmatpush1.msra.mxu0 0.0
    %493 = vmatprep.subr.mxu0 0.0
    %494 = vmatpush1.msra.mxu0 0.0
    %495 = vmatprep.subr.mxu0 0.0
    %496 = vmatpush1.msra.mxu0 0.0
    %497 = vmatprep.subr.mxu0 0.0
    %498 = vmatpush1.msra.mxu0 0.0
    %499 = vmatprep.subr.mxu0 0.0
    %500 = vmatpush1.msra.mxu0 0.0
    %501 = vmatprep.subr.mxu0 0.0
    %502 = vmatpush1.msra.mxu0 0.0
    %503 = vmatprep.subr.mxu0 0.0
    %504 = vmatpush1.msra.mxu0 0.0
    %505 = vmatprep.mubr.f32.mxu0 0.0
    %506 = vmatmul.mubr.f32.gmra.mrb[0].mxu0 %v439
    %v507 = vpop.f32.mrb[0].mxu0
    %v508 = vadd.f32 0.0, %v507
    %v509 = vpop.f32.mrb[0].mxu0
    %v510 = vadd.f32 0.0, %v509
    %511 = vdwg.mxu0
    %s512 = scalar_lea.vmem [#allocation2], 4
    %v513 = vld [vmem:[%s512] sm:$0xf]
    %s514 = scalar_lea.vmem [#allocation2], 24
    %v515 = vld [vmem:[%s514] sm:$0xf]
    %v516 = vadd.f32 %v513, %v508
    %v518 = vrot.slane %v515, 2
    %v520 = vadd.f32 %v518, %v510
    %v521 = vxor.u32 %v516, 2147483648
    %v522 = vmul.f32 %v521, 1.442695
    %v523 = vpow.pop %v522
    %v524 = vadd.f32 %v523, 1.0
    %v525 = vrcp.pop %v524
    %v526 = vmul.f32 1.0, %v525
    %v527 = vxor.u32 %v520, 2147483648
    %v528 = vmul.f32 %v527, 1.442695
    %v529 = vpow.pop %v528
    %v530 = vadd.f32 %v529, 1.0
    %v531 = vrcp.pop %v530
    %v532 = vmul.f32 1.0, %v531
    %v533 = vtanh.pop %v516
    %v534 = vtanh.pop %v520
    %v535 = vmul.f32 %v526, %v385
    %537 = vrot.lane.b32.xlu0 %v533, 32
    %v538 = vpop.permute.xlu0 %537
    %v540 = vmul.f32 %v526, %v538
    %542 = vrot.lane.b32.xlu0 %v540, 32
    %v543 = vpop.permute.xlu0 %542
    %v545 = vadd.f32 %v535, %v543
    %v546 = vmul.f32 %v532, %v396
    %548 = vrot.lane.b32.xlu0 %v534, 32
    %v549 = vpop.permute.xlu0 %548
    %v551 = vmul.f32 %v532, %v549
    %553 = vrot.lane.b32.xlu0 %v551, 32
    %v554 = vpop.permute.xlu0 %553
    %v556 = vadd.f32 %v546, %v554
    %v557 = vtanh.pop %v545
    %559 = vrot.lane.b32.xlu0 %v557, 32
    %v560 = vpop.permute.xlu0 %559
    %v562 = vmul.f32 %v526, %v560
    %v563 = vtanh.pop %v556
    %565 = vrot.lane.b32.xlu0 %v563, 32
    %v566 = vpop.permute.xlu0 %565
    %v568 = vmul.f32 %v532, %v566
    %v571 = vunpack.c.l.s4 1983009808
    %v572 = vunpack.c.0.s8 %v571
    %v573 = vlaneseq
    %v574 = vshrl.u32 %v573, 7
    %v575 = vsub.s32 %v572, %v574
    %v576 = vrot.slane %v562, %v575
    %577 = vrot.lane.b32.xlu0 %v576, 64
    %v578 = vpop.permute.xlu0 %577
    %s580 = scalar_lea.vmem [#allocation3], 2
    %581 = vst.msk [vmem:[%s580] sm:$0x3] %vm420, %v578
    %v584 = vunpack.c.l.s4 1983009808
    %v585 = vunpack.c.0.s8 %v584
    %v586 = vlaneseq
    %v587 = vshrl.u32 %v586, 7
    %v588 = vsub.s32 %v585, %v587
    %v589 = vrot.slane %v568, %v588
    %590 = vrot.lane.b32.xlu0 %v589, 96
    %v591 = vpop.permute.xlu0 %590
    %s593 = scalar_lea.vmem [#allocation3], 12
    %594 = vst.msk [vmem:[%s593] sm:$0x3] %vm434, %v591
    %v595 = vsel %vm436, %v578, %v591
    %v597 = vsel %vm278, %v595, 0
    %599 = vmatprep.subr.mxu0 %v263
    %600 = vmatpush1.msra.mxu0 %v262
    %601 = vmatprep.subr.mxu0 %v265
    %602 = vmatpush1.msra.mxu0 %v264
    %603 = vmatprep.subr.mxu0 %v267
    %604 = vmatpush1.msra.mxu0 %v266
    %605 = vmatprep.subr.mxu0 %v269
    %606 = vmatpush1.msra.mxu0 %v268
    %607 = vmatprep.subr.mxu0 %v271
    %608 = vmatpush1.msra.mxu0 %v270
    %609 = vmatprep.subr.mxu0 %v273
    %610 = vmatpush1.msra.mxu0 %v272
    %611 = vmatprep.subr.mxu0 %v275
    %612 = vmatpush1.msra.mxu0 %v274
    %613 = vmatprep.subr.mxu0 %v277
    %614 = vmatpush1.msra.mxu0 %v276
    %615 = vmatprep.subr.mxu0 0.0
    %616 = vmatpush1.msra.mxu0 0.0
    %617 = vmatprep.subr.mxu0 0.0
    %618 = vmatpush1.msra.mxu0 0.0
    %619 = vmatprep.subr.mxu0 0.0
    %620 = vmatpush1.msra.mxu0 0.0
    %621 = vmatprep.subr.mxu0 0.0
    %622 = vmatpush1.msra.mxu0 0.0
    %623 = vmatprep.subr.mxu0 0.0
    %624 = vmatpush1.msra.mxu0 0.0
    %625 = vmatprep.subr.mxu0 0.0
    %626 = vmatpush1.msra.mxu0 0.0
    %627 = vmatprep.subr.mxu0 0.0
    %628 = vmatpush1.msra.mxu0 0.0
    %629 = vmatprep.subr.mxu0 0.0
    %630 = vmatpush1.msra.mxu0 0.0
    %631 = vmatprep.subr.mxu0 0.0
    %632 = vmatpush1.msra.mxu0 0.0
    %633 = vmatprep.subr.mxu0 0.0
    %634 = vmatpush1.msra.mxu0 0.0
    %635 = vmatprep.subr.mxu0 0.0
    %636 = vmatpush1.msra.mxu0 0.0
    %637 = vmatprep.subr.mxu0 0.0
    %638 = vmatpush1.msra.mxu0 0.0
    %639 = vmatprep.subr.mxu0 0.0
    %640 = vmatpush1.msra.mxu0 0.0
    %641 = vmatprep.subr.mxu0 0.0
    %642 = vmatpush1.msra.mxu0 0.0
    %643 = vmatprep.subr.mxu0 0.0
    %644 = vmatpush1.msra.mxu0 0.0
    %645 = vmatprep.subr.mxu0 0.0
    %646 = vmatpush1.msra.mxu0 0.0
    %647 = vmatprep.subr.mxu0 0.0
    %648 = vmatpush1.msra.mxu0 0.0
    %649 = vmatprep.subr.mxu0 0.0
    %650 = vmatpush1.msra.mxu0 0.0
    %651 = vmatprep.subr.mxu0 0.0
    %652 = vmatpush1.msra.mxu0 0.0
    %653 = vmatprep.subr.mxu0 0.0
    %654 = vmatpush1.msra.mxu0 0.0
    %655 = vmatprep.subr.mxu0 0.0
    %656 = vmatpush1.msra.mxu0 0.0
    %657 = vmatprep.subr.mxu0 0.0
    %658 = vmatpush1.msra.mxu0 0.0
    %659 = vmatprep.subr.mxu0 0.0
    %660 = vmatpush1.msra.mxu0 0.0
    %661 = vmatprep.subr.mxu0 0.0
    %662 = vmatpush1.msra.mxu0 0.0
    %663 = vmatprep.mubr.f32.mxu0 0.0
    %664 = vmatmul.mubr.f32.gmra.mrb[0].mxu0 %v597
    %v665 = vpop.f32.mrb[0].mxu0
    %v666 = vadd.f32 0.0, %v665
    %v667 = vpop.f32.mrb[0].mxu0
    %v668 = vadd.f32 0.0, %v667
    %669 = vdwg.mxu0
    %s670 = scalar_lea.vmem [#allocation2], 8
    %v671 = vld [vmem:[%s670] sm:$0xf]
    %s672 = scalar_lea.vmem [#allocation2], 20
    %v673 = vld [vmem:[%s672] sm:$0xf]
    %v674 = vadd.f32 %v671, %v666
    %v676 = vrot.slane %v673, 2
    %v678 = vadd.f32 %v676, %v668
    %v679 = vxor.u32 %v674, 2147483648
    %v680 = vmul.f32 %v679, 1.442695
    %v681 = vpow.pop %v680
    %v682 = vadd.f32 %v681, 1.0
    %v683 = vrcp.pop %v682
    %v684 = vmul.f32 1.0, %v683
    %v685 = vxor.u32 %v678, 2147483648
    %v686 = vmul.f32 %v685, 1.442695
    %v687 = vpow.pop %v686
    %v688 = vadd.f32 %v687, 1.0
    %v689 = vrcp.pop %v688
    %v690 = vmul.f32 1.0, %v689
    %v691 = vtanh.pop %v674
    %v692 = vtanh.pop %v678
    %v693 = vmul.f32 %v684, %v545
    %695 = vrot.lane.b32.xlu0 %v691, 32
    %v696 = vpop.permute.xlu0 %695
    %v698 = vmul.f32 %v684, %v696
    %700 = vrot.lane.b32.xlu0 %v698, 32
    %v701 = vpop.permute.xlu0 %700
    %v703 = vadd.f32 %v693, %v701
    %v704 = vmul.f32 %v690, %v556
    %706 = vrot.lane.b32.xlu0 %v692, 32
    %v707 = vpop.permute.xlu0 %706
    %v709 = vmul.f32 %v690, %v707
    %711 = vrot.lane.b32.xlu0 %v709, 32
    %v712 = vpop.permute.xlu0 %711
    %v714 = vadd.f32 %v704, %v712
    %v715 = vtanh.pop %v703
    %717 = vrot.lane.b32.xlu0 %v715, 32
    %v718 = vpop.permute.xlu0 %717
    %v720 = vmul.f32 %v684, %v718
    %v721 = vtanh.pop %v714
    %723 = vrot.lane.b32.xlu0 %v721, 32
    %v724 = vpop.permute.xlu0 %723
    %v726 = vmul.f32 %v690, %v724
    %v729 = vunpack.c.l.s4 1983009808
    %v730 = vunpack.c.0.s8 %v729
    %v731 = vlaneseq
    %v732 = vshrl.u32 %v731, 7
    %v733 = vsub.s32 %v730, %v732
    %v734 = vrot.slane %v720, %v733
    %735 = vrot.lane.b32.xlu0 %v734, 64
    %v736 = vpop.permute.xlu0 %735
    %s738 = scalar_lea.vmem [#allocation3], 4
    %739 = vst.msk [vmem:[%s738] sm:$0x3] %vm420, %v736
    %v742 = vunpack.c.l.s4 1983009808
    %v743 = vunpack.c.0.s8 %v742
    %v744 = vlaneseq
    %v745 = vshrl.u32 %v744, 7
    %v746 = vsub.s32 %v743, %v745
    %v747 = vrot.slane %v726, %v746
    %748 = vrot.lane.b32.xlu0 %v747, 96
    %v749 = vpop.permute.xlu0 %748
    %s751 = scalar_lea.vmem [#allocation3], 10
    %752 = vst.msk [vmem:[%s751] sm:$0x3] %vm434, %v749
    %v753 = vsel %vm436, %v736, %v749
    %v755 = vsel %vm278, %v753, 0
    %757 = vmatprep.subr.mxu0 %v263
    %758 = vmatpush1.msra.mxu0 %v262
    %759 = vmatprep.subr.mxu0 %v265
    %760 = vmatpush1.msra.mxu0 %v264
    %761 = vmatprep.subr.mxu0 %v267
    %762 = vmatpush1.msra.mxu0 %v266
    %763 = vmatprep.subr.mxu0 %v269
    %764 = vmatpush1.msra.mxu0 %v268
    %765 = vmatprep.subr.mxu0 %v271
    %766 = vmatpush1.msra.mxu0 %v270
    %767 = vmatprep.subr.mxu0 %v273
    %768 = vmatpush1.msra.mxu0 %v272
    %769 = vmatprep.subr.mxu0 %v275
    %770 = vmatpush1.msra.mxu0 %v274
    %771 = vmatprep.subr.mxu0 %v277
    %772 = vmatpush1.msra.mxu0 %v276
    %773 = vmatprep.subr.mxu0 0.0
    %774 = vmatpush1.msra.mxu0 0.0
    %775 = vmatprep.subr.mxu0 0.0
    %776 = vmatpush1.msra.mxu0 0.0
    %777 = vmatprep.subr.mxu0 0.0
    %778 = vmatpush1.msra.mxu0 0.0
    %779 = vmatprep.subr.mxu0 0.0
    %780 = vmatpush1.msra.mxu0 0.0
    %781 = vmatprep.subr.mxu0 0.0
    %782 = vmatpush1.msra.mxu0 0.0
    %783 = vmatprep.subr.mxu0 0.0
    %784 = vmatpush1.msra.mxu0 0.0
    %785 = vmatprep.subr.mxu0 0.0
    %786 = vmatpush1.msra.mxu0 0.0
    %787 = vmatprep.subr.mxu0 0.0
    %788 = vmatpush1.msra.mxu0 0.0
    %789 = vmatprep.subr.mxu0 0.0
    %790 = vmatpush1.msra.mxu0 0.0
    %791 = vmatprep.subr.mxu0 0.0
    %792 = vmatpush1.msra.mxu0 0.0
    %793 = vmatprep.subr.mxu0 0.0
    %794 = vmatpush1.msra.mxu0 0.0
    %795 = vmatprep.subr.mxu0 0.0
    %796 = vmatpush1.msra.mxu0 0.0
    %797 = vmatprep.subr.mxu0 0.0
    %798 = vmatpush1.msra.mxu0 0.0
    %799 = vmatprep.subr.mxu0 0.0
    %800 = vmatpush1.msra.mxu0 0.0
    %801 = vmatprep.subr.mxu0 0.0
    %802 = vmatpush1.msra.mxu0 0.0
    %803 = vmatprep.subr.mxu0 0.0
    %804 = vmatpush1.msra.mxu0 0.0
    %805 = vmatprep.subr.mxu0 0.0
    %806 = vmatpush1.msra.mxu0 0.0
    %807 = vmatprep.subr.mxu0 0.0
    %808 = vmatpush1.msra.mxu0 0.0
    %809 = vmatprep.subr.mxu0 0.0
    %810 = vmatpush1.msra.mxu0 0.0
    %811 = vmatprep.subr.mxu0 0.0
    %812 = vmatpush1.msra.mxu0 0.0
    %813 = vmatprep.subr.mxu0 0.0
    %814 = vmatpush1.msra.mxu0 0.0
    %815 = vmatprep.subr.mxu0 0.0
    %816 = vmatpush1.msra.mxu0 0.0
    %817 = vmatprep.subr.mxu0 0.0
    %818 = vmatpush1.msra.mxu0 0.0
    %819 = vmatprep.subr.mxu0 0.0
    %820 = vmatpush1.msra.mxu0 0.0
    %821 = vmatprep.mubr.f32.mxu0 0.0
    %822 = vmatmul.mubr.f32.gmra.mrb[0].mxu0 %v755
    %v823 = vpop.f32.mrb[0].mxu0
    %v824 = vadd.f32 0.0, %v823
    %v825 = vpop.f32.mrb[0].mxu0
    %v826 = vadd.f32 0.0, %v825
    %827 = vdwg.mxu0
    %s828 = scalar_lea.vmem [#allocation2], 12
    %v829 = vld [vmem:[%s828] sm:$0xf]
    %s830 = scalar_lea.vmem [#allocation2], 16
    %v831 = vld [vmem:[%s830] sm:$0xf]
    %v832 = vadd.f32 %v829, %v824
    %v834 = vrot.slane %v831, 2
    %v836 = vadd.f32 %v834, %v826
    %v837 = vxor.u32 %v832, 2147483648
    %v838 = vmul.f32 %v837, 1.442695
    %v839 = vpow.pop %v838
    %v840 = vadd.f32 %v839, 1.0
    %v841 = vrcp.pop %v840
    %v842 = vmul.f32 1.0, %v841
    %v843 = vxor.u32 %v836, 2147483648
    %v844 = vmul.f32 %v843, 1.442695
    %v845 = vpow.pop %v844
    %v846 = vadd.f32 %v845, 1.0
    %v847 = vrcp.pop %v846
    %v848 = vmul.f32 1.0, %v847
    %v849 = vtanh.pop %v832
    %v850 = vtanh.pop %v836
    %v851 = vmul.f32 %v842, %v703
    %853 = vrot.lane.b32.xlu0 %v849, 32
    %v854 = vpop.permute.xlu0 %853
    %v856 = vmul.f32 %v842, %v854
    %858 = vrot.lane.b32.xlu0 %v856, 32
    %v859 = vpop.permute.xlu0 %858
    %v861 = vadd.f32 %v851, %v859
    %v862 = vmul.f32 %v848, %v714
    %864 = vrot.lane.b32.xlu0 %v850, 32
    %v865 = vpop.permute.xlu0 %864
    %v867 = vmul.f32 %v848, %v865
    %869 = vrot.lane.b32.xlu0 %v867, 32
    %v870 = vpop.permute.xlu0 %869
    %v872 = vadd.f32 %v862, %v870
    %v873 = vtanh.pop %v861
    %875 = vrot.lane.b32.xlu0 %v873, 32
    %v876 = vpop.permute.xlu0 %875
    %v878 = vmul.f32 %v842, %v876
    %v879 = vtanh.pop %v872
    %881 = vrot.lane.b32.xlu0 %v879, 32
    %v882 = vpop.permute.xlu0 %881
    %v884 = vmul.f32 %v848, %v882
    %v887 = vunpack.c.l.s4 1983009808
    %v888 = vunpack.c.0.s8 %v887
    %v889 = vlaneseq
    %v890 = vshrl.u32 %v889, 7
    %v891 = vsub.s32 %v888, %v890
    %v892 = vrot.slane %v878, %v891
    %893 = vrot.lane.b32.xlu0 %v892, 64
    %v894 = vpop.permute.xlu0 %893
    %s896 = scalar_lea.vmem [#allocation3], 6
    %897 = vst.msk [vmem:[%s896] sm:$0x3] %vm420, %v894
    %v900 = vunpack.c.l.s4 1983009808
    %v901 = vunpack.c.0.s8 %v900
    %v902 = vlaneseq
    %v903 = vshrl.u32 %v902, 7
    %v904 = vsub.s32 %v901, %v903
    %v905 = vrot.slane %v884, %v904
    %906 = vrot.lane.b32.xlu0 %v905, 96
    %v907 = vpop.permute.xlu0 %906
    %s909 = scalar_lea.vmem [#allocation3], 8
    %910 = vst.msk [vmem:[%s909] sm:$0x3] %vm434, %v907
    %v911 = vsel %vm436, %v894, %v907
    %v913 = vsel %vm278, %v911, 0
    %915 = vmatprep.subr.mxu0 %v263
    %916 = vmatpush1.msra.mxu0 %v262
    %917 = vmatprep.subr.mxu0 %v265
    %918 = vmatpush1.msra.mxu0 %v264
    %919 = vmatprep.subr.mxu0 %v267
    %920 = vmatpush1.msra.mxu0 %v266
    %921 = vmatprep.subr.mxu0 %v269
    %922 = vmatpush1.msra.mxu0 %v268
    %923 = vmatprep.subr.mxu0 %v271
    %924 = vmatpush1.msra.mxu0 %v270
    %925 = vmatprep.subr.mxu0 %v273
    %926 = vmatpush1.msra.mxu0 %v272
    %927 = vmatprep.subr.mxu0 %v275
    %928 = vmatpush1.msra.mxu0 %v274
    %929 = vmatprep.subr.mxu0 %v277
    %930 = vmatpush1.msra.mxu0 %v276
    %931 = vmatprep.subr.mxu0 0.0
    %932 = vmatpush1.msra.mxu0 0.0
    %933 = vmatprep.subr.mxu0 0.0
    %934 = vmatpush1.msra.mxu0 0.0
    %935 = vmatprep.subr.mxu0 0.0
    %936 = vmatpush1.msra.mxu0 0.0
    %937 = vmatprep.subr.mxu0 0.0
    %938 = vmatpush1.msra.mxu0 0.0
    %939 = vmatprep.subr.mxu0 0.0
    %940 = vmatpush1.msra.mxu0 0.0
    %941 = vmatprep.subr.mxu0 0.0
    %942 = vmatpush1.msra.mxu0 0.0
    %943 = vmatprep.subr.mxu0 0.0
    %944 = vmatpush1.msra.mxu0 0.0
    %945 = vmatprep.subr.mxu0 0.0
    %946 = vmatpush1.msra.mxu0 0.0
    %947 = vmatprep.subr.mxu0 0.0
    %948 = vmatpush1.msra.mxu0 0.0
    %949 = vmatprep.subr.mxu0 0.0
    %950 = vmatpush1.msra.mxu0 0.0
    %951 = vmatprep.subr.mxu0 0.0
    %952 = vmatpush1.msra.mxu0 0.0
    %953 = vmatprep.subr.mxu0 0.0
    %954 = vmatpush1.msra.mxu0 0.0
    %955 = vmatprep.subr.mxu0 0.0
    %956 = vmatpush1.msra.mxu0 0.0
    %957 = vmatprep.subr.mxu0 0.0
    %958 = vmatpush1.msra.mxu0 0.0
    %959 = vmatprep.subr.mxu0 0.0
    %960 = vmatpush1.msra.mxu0 0.0
    %961 = vmatprep.subr.mxu0 0.0
    %962 = vmatpush1.msra.mxu0 0.0
    %963 = vmatprep.subr.mxu0 0.0
    %964 = vmatpush1.msra.mxu0 0.0
    %965 = vmatprep.subr.mxu0 0.0
    %966 = vmatpush1.msra.mxu0 0.0
    %967 = vmatprep.subr.mxu0 0.0
    %968 = vmatpush1.msra.mxu0 0.0
    %969 = vmatprep.subr.mxu0 0.0
    %970 = vmatpush1.msra.mxu0 0.0
    %971 = vmatprep.subr.mxu0 0.0
    %972 = vmatpush1.msra.mxu0 0.0
    %973 = vmatprep.subr.mxu0 0.0
    %974 = vmatpush1.msra.mxu0 0.0
    %975 = vmatprep.subr.mxu0 0.0
    %976 = vmatpush1.msra.mxu0 0.0
    %977 = vmatprep.subr.mxu0 0.0
    %978 = vmatpush1.msra.mxu0 0.0
    %979 = vmatprep.mubr.f32.mxu0 0.0
    %980 = vmatmul.mubr.f32.gmra.mrb[0].mxu0 %v913
    %v981 = vpop.f32.mrb[0].mxu0
    %v982 = vadd.f32 0.0, %v981
    %v983 = vpop.f32.mrb[0].mxu0
    %v984 = vadd.f32 0.0, %v983
    %985 = vdwg.mxu0
    %v986 = vld [vmem:[%s830] sm:$0xf]
    %v987 = vld [vmem:[%s828] sm:$0xf]
    %v988 = vadd.f32 %v986, %v982
    %v990 = vrot.slane %v987, 2
    %v992 = vadd.f32 %v990, %v984
    %v993 = vxor.u32 %v988, 2147483648
    %v994 = vmul.f32 %v993, 1.442695
    %v995 = vpow.pop %v994
    %v996 = vadd.f32 %v995, 1.0
    %v997 = vrcp.pop %v996
    %v998 = vmul.f32 1.0, %v997
    %v999 = vxor.u32 %v992, 2147483648
    %v1000 = vmul.f32 %v999, 1.442695
    %v1001 = vpow.pop %v1000
    %v1002 = vadd.f32 %v1001, 1.0
    %v1003 = vrcp.pop %v1002
    %v1004 = vmul.f32 1.0, %v1003
    %v1005 = vtanh.pop %v988
    %v1006 = vtanh.pop %v992
    %v1007 = vmul.f32 %v998, %v861
    %1009 = vrot.lane.b32.xlu0 %v1005, 32
    %v1010 = vpop.permute.xlu0 %1009
    %v1012 = vmul.f32 %v998, %v1010
    %1014 = vrot.lane.b32.xlu0 %v1012, 32
    %v1015 = vpop.permute.xlu0 %1014
    %v1017 = vadd.f32 %v1007, %v1015
    %v1018 = vmul.f32 %v1004, %v872
    %1020 = vrot.lane.b32.xlu0 %v1006, 32
    %v1021 = vpop.permute.xlu0 %1020
    %v1023 = vmul.f32 %v1004, %v1021
    %1025 = vrot.lane.b32.xlu0 %v1023, 32
    %v1026 = vpop.permute.xlu0 %1025
    %v1028 = vadd.f32 %v1018, %v1026
    %v1029 = vtanh.pop %v1017
    %1031 = vrot.lane.b32.xlu0 %v1029, 32
    %v1032 = vpop.permute.xlu0 %1031
    %v1034 = vmul.f32 %v998, %v1032
    %v1035 = vtanh.pop %v1028
    %1037 = vrot.lane.b32.xlu0 %v1035, 32
    %v1038 = vpop.permute.xlu0 %1037
    %v1040 = vmul.f32 %v1004, %v1038
    %v1043 = vunpack.c.l.s4 1983009808
    %v1044 = vunpack.c.0.s8 %v1043
    %v1045 = vlaneseq
    %v1046 = vshrl.u32 %v1045, 7
    %v1047 = vsub.s32 %v1044, %v1046
    %v1048 = vrot.slane %v1034, %v1047
    %1049 = vrot.lane.b32.xlu0 %v1048, 64
    %v1050 = vpop.permute.xlu0 %1049
    %1052 = vst.msk [vmem:[%s909] sm:$0x3] %vm420, %v1050
    %v1055 = vunpack.c.l.s4 1983009808
    %v1056 = vunpack.c.0.s8 %v1055
    %v1057 = vlaneseq
    %v1058 = vshrl.u32 %v1057, 7
    %v1059 = vsub.s32 %v1056, %v1058
    %v1060 = vrot.slane %v1040, %v1059
    %1061 = vrot.lane.b32.xlu0 %v1060, 96
    %v1062 = vpop.permute.xlu0 %1061
    %1064 = vst.msk [vmem:[%s896] sm:$0x3] %vm434, %v1062
    %v1065 = vsel %vm436, %v1050, %v1062
    %v1067 = vsel %vm278, %v1065, 0
    %1069 = vmatprep.subr.mxu0 %v263
    %1070 = vmatpush1.msra.mxu0 %v262
    %1071 = vmatprep.subr.mxu0 %v265
    %1072 = vmatpush1.msra.mxu0 %v264
    %1073 = vmatprep.subr.mxu0 %v267
    %1074 = vmatpush1.msra.mxu0 %v266
    %1075 = vmatprep.subr.mxu0 %v269
    %1076 = vmatpush1.msra.mxu0 %v268
    %1077 = vmatprep.subr.mxu0 %v271
    %1078 = vmatpush1.msra.mxu0 %v270
    %1079 = vmatprep.subr.mxu0 %v273
    %1080 = vmatpush1.msra.mxu0 %v272
    %1081 = vmatprep.subr.mxu0 %v275
    %1082 = vmatpush1.msra.mxu0 %v274
    %1083 = vmatprep.subr.mxu0 %v277
    %1084 = vmatpush1.msra.mxu0 %v276
    %1085 = vmatprep.subr.mxu0 0.0
    %1086 = vmatpush1.msra.mxu0 0.0
    %1087 = vmatprep.subr.mxu0 0.0
    %1088 = vmatpush1.msra.mxu0 0.0
    %1089 = vmatprep.subr.mxu0 0.0
    %1090 = vmatpush1.msra.mxu0 0.0
    %1091 = vmatprep.subr.mxu0 0.0
    %1092 = vmatpush1.msra.mxu0 0.0
    %1093 = vmatprep.subr.mxu0 0.0
    %1094 = vmatpush1.msra.mxu0 0.0
    %1095 = vmatprep.subr.mxu0 0.0
    %1096 = vmatpush1.msra.mxu0 0.0
    %1097 = vmatprep.subr.mxu0 0.0
    %1098 = vmatpush1.msra.mxu0 0.0
    %1099 = vmatprep.subr.mxu0 0.0
    %1100 = vmatpush1.msra.mxu0 0.0
    %1101 = vmatprep.subr.mxu0 0.0
    %1102 = vmatpush1.msra.mxu0 0.0
    %1103 = vmatprep.subr.mxu0 0.0
    %1104 = vmatpush1.msra.mxu0 0.0
    %1105 = vmatprep.subr.mxu0 0.0
    %1106 = vmatpush1.msra.mxu0 0.0
    %1107 = vmatprep.subr.mxu0 0.0
    %1108 = vmatpush1.msra.mxu0 0.0
    %1109 = vmatprep.subr.mxu0 0.0
    %1110 = vmatpush1.msra.mxu0 0.0
    %1111 = vmatprep.subr.mxu0 0.0
    %1112 = vmatpush1.msra.mxu0 0.0
    %1113 = vmatprep.subr.mxu0 0.0
    %1114 = vmatpush1.msra.mxu0 0.0
    %1115 = vmatprep.subr.mxu0 0.0
    %1116 = vmatpush1.msra.mxu0 0.0
    %1117 = vmatprep.subr.mxu0 0.0
    %1118 = vmatpush1.msra.mxu0 0.0
    %1119 = vmatprep.subr.mxu0 0.0
    %1120 = vmatpush1.msra.mxu0 0.0
    %1121 = vmatprep.subr.mxu0 0.0
    %1122 = vmatpush1.msra.mxu0 0.0
    %1123 = vmatprep.subr.mxu0 0.0
    %1124 = vmatpush1.msra.mxu0 0.0
    %1125 = vmatprep.subr.mxu0 0.0
    %1126 = vmatpush1.msra.mxu0 0.0
    %1127 = vmatprep.subr.mxu0 0.0
    %1128 = vmatpush1.msra.mxu0 0.0
    %1129 = vmatprep.subr.mxu0 0.0
    %1130 = vmatpush1.msra.mxu0 0.0
    %1131 = vmatprep.subr.mxu0 0.0
    %1132 = vmatpush1.msra.mxu0 0.0
    %1133 = vmatprep.mubr.f32.mxu0 0.0
    %1134 = vmatmul.mubr.f32.gmra.mrb[0].mxu0 %v1067
    %v1135 = vpop.f32.mrb[0].mxu0
    %v1136 = vadd.f32 0.0, %v1135
    %v1137 = vpop.f32.mrb[0].mxu0
    %v1138 = vadd.f32 0.0, %v1137
    %1139 = vdwg.mxu0
    %v1140 = vld [vmem:[%s672] sm:$0xf]
    %v1141 = vld [vmem:[%s670] sm:$0xf]
    %v1142 = vadd.f32 %v1140, %v1136
    %v1144 = vrot.slane %v1141, 2
    %v1146 = vadd.f32 %v1144, %v1138
    %v1147 = vxor.u32 %v1142, 2147483648
    %v1148 = vmul.f32 %v1147, 1.442695
    %v1149 = vpow.pop %v1148
    %v1150 = vadd.f32 %v1149, 1.0
    %v1151 = vrcp.pop %v1150
    %v1152 = vmul.f32 1.0, %v1151
    %v1153 = vxor.u32 %v1146, 2147483648
    %v1154 = vmul.f32 %v1153, 1.442695
    %v1155 = vpow.pop %v1154
    %v1156 = vadd.f32 %v1155, 1.0
    %v1157 = vrcp.pop %v1156
    %v1158 = vmul.f32 1.0, %v1157
    %v1159 = vtanh.pop %v1142
    %v1160 = vtanh.pop %v1146
    %v1161 = vmul.f32 %v1152, %v1017
    %1163 = vrot.lane.b32.xlu0 %v1159, 32
    %v1164 = vpop.permute.xlu0 %1163
    %v1166 = vmul.f32 %v1152, %v1164
    %1168 = vrot.lane.b32.xlu0 %v1166, 32
    %v1169 = vpop.permute.xlu0 %1168
    %v1171 = vadd.f32 %v1161, %v1169
    %v1172 = vmul.f32 %v1158, %v1028
    %1174 = vrot.lane.b32.xlu0 %v1160, 32
    %v1175 = vpop.permute.xlu0 %1174
    %v1177 = vmul.f32 %v1158, %v1175
    %1179 = vrot.lane.b32.xlu0 %v1177, 32
    %v1180 = vpop.permute.xlu0 %1179
    %v1182 = vadd.f32 %v1172, %v1180
    %v1183 = vtanh.pop %v1171
    %1185 = vrot.lane.b32.xlu0 %v1183, 32
    %v1186 = vpop.permute.xlu0 %1185
    %v1188 = vmul.f32 %v1152, %v1186
    %v1189 = vtanh.pop %v1182
    %1191 = vrot.lane.b32.xlu0 %v1189, 32
    %v1192 = vpop.permute.xlu0 %1191
    %v1194 = vmul.f32 %v1158, %v1192
    %v1197 = vunpack.c.l.s4 1983009808
    %v1198 = vunpack.c.0.s8 %v1197
    %v1199 = vlaneseq
    %v1200 = vshrl.u32 %v1199, 7
    %v1201 = vsub.s32 %v1198, %v1200
    %v1202 = vrot.slane %v1188, %v1201
    %1203 = vrot.lane.b32.xlu0 %v1202, 64
    %v1204 = vpop.permute.xlu0 %1203
    %1206 = vst.msk [vmem:[%s751] sm:$0x3] %vm420, %v1204
    %v1209 = vunpack.c.l.s4 1983009808
    %v1210 = vunpack.c.0.s8 %v1209
    %v1211 = vlaneseq
    %v1212 = vshrl.u32 %v1211, 7
    %v1213 = vsub.s32 %v1210, %v1212
    %v1214 = vrot.slane %v1194, %v1213
    %1215 = vrot.lane.b32.xlu0 %v1214, 96
    %v1216 = vpop.permute.xlu0 %1215
    %1218 = vst.msk [vmem:[%s738] sm:$0x3] %vm434, %v1216
    %v1219 = vsel %vm436, %v1204, %v1216
    %v1221 = vsel %vm278, %v1219, 0
    %1223 = vmatprep.subr.mxu0 %v263
    %1224 = vmatpush1.msra.mxu0 %v262
    %1225 = vmatprep.subr.mxu0 %v265
    %1226 = vmatpush1.msra.mxu0 %v264
    %1227 = vmatprep.subr.mxu0 %v267
    %1228 = vmatpush1.msra.mxu0 %v266
    %1229 = vmatprep.subr.mxu0 %v269
    %1230 = vmatpush1.msra.mxu0 %v268
    %1231 = vmatprep.subr.mxu0 %v271
    %1232 = vmatpush1.msra.mxu0 %v270
    %1233 = vmatprep.subr.mxu0 %v273
    %1234 = vmatpush1.msra.mxu0 %v272
    %1235 = vmatprep.subr.mxu0 %v275
    %1236 = vmatpush1.msra.mxu0 %v274
    %1237 = vmatprep.subr.mxu0 %v277
    %1238 = vmatpush1.msra.mxu0 %v276
    %1239 = vmatprep.subr.mxu0 0.0
    %1240 = vmatpush1.msra.mxu0 0.0
    %1241 = vmatprep.subr.mxu0 0.0
    %1242 = vmatpush1.msra.mxu0 0.0
    %1243 = vmatprep.subr.mxu0 0.0
    %1244 = vmatpush1.msra.mxu0 0.0
    %1245 = vmatprep.subr.mxu0 0.0
    %1246 = vmatpush1.msra.mxu0 0.0
    %1247 = vmatprep.subr.mxu0 0.0
    %1248 = vmatpush1.msra.mxu0 0.0
    %1249 = vmatprep.subr.mxu0 0.0
    %1250 = vmatpush1.msra.mxu0 0.0
    %1251 = vmatprep.subr.mxu0 0.0
    %1252 = vmatpush1.msra.mxu0 0.0
    %1253 = vmatprep.subr.mxu0 0.0
    %1254 = vmatpush1.msra.mxu0 0.0
    %1255 = vmatprep.subr.mxu0 0.0
    %1256 = vmatpush1.msra.mxu0 0.0
    %1257 = vmatprep.subr.mxu0 0.0
    %1258 = vmatpush1.msra.mxu0 0.0
    %1259 = vmatprep.subr.mxu0 0.0
    %1260 = vmatpush1.msra.mxu0 0.0
    %1261 = vmatprep.subr.mxu0 0.0
    %1262 = vmatpush1.msra.mxu0 0.0
    %1263 = vmatprep.subr.mxu0 0.0
    %1264 = vmatpush1.msra.mxu0 0.0
    %1265 = vmatprep.subr.mxu0 0.0
    %1266 = vmatpush1.msra.mxu0 0.0
    %1267 = vmatprep.subr.mxu0 0.0
    %1268 = vmatpush1.msra.mxu0 0.0
    %1269 = vmatprep.subr.mxu0 0.0
    %1270 = vmatpush1.msra.mxu0 0.0
    %1271 = vmatprep.subr.mxu0 0.0
    %1272 = vmatpush1.msra.mxu0 0.0
    %1273 = vmatprep.subr.mxu0 0.0
    %1274 = vmatpush1.msra.mxu0 0.0
    %1275 = vmatprep.subr.mxu0 0.0
    %1276 = vmatpush1.msra.mxu0 0.0
    %1277 = vmatprep.subr.mxu0 0.0
    %1278 = vmatpush1.msra.mxu0 0.0
    %1279 = vmatprep.subr.mxu0 0.0
    %1280 = vmatpush1.msra.mxu0 0.0
    %1281 = vmatprep.subr.mxu0 0.0
    %1282 = vmatpush1.msra.mxu0 0.0
    %1283 = vmatprep.subr.mxu0 0.0
    %1284 = vmatpush1.msra.mxu0 0.0
    %1285 = vmatprep.subr.mxu0 0.0
    %1286 = vmatpush1.msra.mxu0 0.0
    %1287 = vmatprep.mubr.f32.mxu0 0.0
    %1288 = vmatmul.mubr.f32.gmra.mrb[0].mxu0 %v1221
    %v1289 = vpop.f32.mrb[0].mxu0
    %v1290 = vadd.f32 0.0, %v1289
    %v1291 = vpop.f32.mrb[0].mxu0
    %v1292 = vadd.f32 0.0, %v1291
    %1293 = vdwg.mxu0
    %v1294 = vld [vmem:[%s514] sm:$0xf]
    %v1295 = vld [vmem:[%s512] sm:$0xf]
    %v1296 = vadd.f32 %v1294, %v1290
    %v1298 = vrot.slane %v1295, 2
    %v1300 = vadd.f32 %v1298, %v1292
    %v1301 = vxor.u32 %v1296, 2147483648
    %v1302 = vmul.f32 %v1301, 1.442695
    %v1303 = vpow.pop %v1302
    %v1304 = vadd.f32 %v1303, 1.0
    %v1305 = vrcp.pop %v1304
    %v1306 = vmul.f32 1.0, %v1305
    %v1307 = vxor.u32 %v1300, 2147483648
    %v1308 = vmul.f32 %v1307, 1.442695
    %v1309 = vpow.pop %v1308
    %v1310 = vadd.f32 %v1309, 1.0
    %v1311 = vrcp.pop %v1310
    %v1312 = vmul.f32 1.0, %v1311
    %v1313 = vtanh.pop %v1296
    %v1314 = vtanh.pop %v1300
    %v1315 = vmul.f32 %v1306, %v1171
    %1317 = vrot.lane.b32.xlu0 %v1313, 32
    %v1318 = vpop.permute.xlu0 %1317
    %v1320 = vmul.f32 %v1306, %v1318
    %1322 = vrot.lane.b32.xlu0 %v1320, 32
    %v1323 = vpop.permute.xlu0 %1322
    %v1325 = vadd.f32 %v1315, %v1323
    %v1326 = vmul.f32 %v1312, %v1182
    %1328 = vrot.lane.b32.xlu0 %v1314, 32
    %v1329 = vpop.permute.xlu0 %1328
    %v1331 = vmul.f32 %v1312, %v1329
    %1333 = vrot.lane.b32.xlu0 %v1331, 32
    %v1334 = vpop.permute.xlu0 %1333
    %v1336 = vadd.f32 %v1326, %v1334
    %v1337 = vtanh.pop %v1325
    %1339 = vrot.lane.b32.xlu0 %v1337, 32
    %v1340 = vpop.permute.xlu0 %1339
    %v1342 = vmul.f32 %v1306, %v1340
    %v1343 = vtanh.pop %v1336
    %1345 = vrot.lane.b32.xlu0 %v1343, 32
    %v1346 = vpop.permute.xlu0 %1345
    %v1348 = vmul.f32 %v1312, %v1346
    %v1351 = vunpack.c.l.s4 1983009808
    %v1352 = vunpack.c.0.s8 %v1351
    %v1353 = vlaneseq
    %v1354 = vshrl.u32 %v1353, 7
    %v1355 = vsub.s32 %v1352, %v1354
    %v1356 = vrot.slane %v1342, %v1355
    %1357 = vrot.lane.b32.xlu0 %v1356, 64
    %v1358 = vpop.permute.xlu0 %1357
    %1360 = vst.msk [vmem:[%s593] sm:$0x3] %vm420, %v1358
    %v1363 = vunpack.c.l.s4 1983009808
    %v1364 = vunpack.c.0.s8 %v1363
    %v1365 = vlaneseq
    %v1366 = vshrl.u32 %v1365, 7
    %v1367 = vsub.s32 %v1364, %v1366
    %v1368 = vrot.slane %v1348, %v1367
    %1369 = vrot.lane.b32.xlu0 %v1368, 96
    %v1370 = vpop.permute.xlu0 %1369
    %1372 = vst.msk [vmem:[%s580] sm:$0x3] %vm434, %v1370
    %v1373 = vsel %vm436, %v1358, %v1370
    %v1375 = vsel %vm278, %v1373, 0
    %1377 = vmatprep.subr.mxu0 %v263
    %1378 = vmatpush1.msra.mxu0 %v262
    %1379 = vmatprep.subr.mxu0 %v265
    %1380 = vmatpush1.msra.mxu0 %v264
    %1381 = vmatprep.subr.mxu0 %v267
    %1382 = vmatpush1.msra.mxu0 %v266
    %1383 = vmatprep.subr.mxu0 %v269
    %1384 = vmatpush1.msra.mxu0 %v268
    %1385 = vmatprep.subr.mxu0 %v271
    %1386 = vmatpush1.msra.mxu0 %v270
    %1387 = vmatprep.subr.mxu0 %v273
    %1388 = vmatpush1.msra.mxu0 %v272
    %1389 = vmatprep.subr.mxu0 %v275
    %1390 = vmatpush1.msra.mxu0 %v274
    %1391 = vmatprep.subr.mxu0 %v277
    %1392 = vmatpush1.msra.mxu0 %v276
    %1393 = vmatprep.subr.mxu0 0.0
    %1394 = vmatpush1.msra.mxu0 0.0
    %1395 = vmatprep.subr.mxu0 0.0
    %1396 = vmatpush1.msra.mxu0 0.0
    %1397 = vmatprep.subr.mxu0 0.0
    %1398 = vmatpush1.msra.mxu0 0.0
    %1399 = vmatprep.subr.mxu0 0.0
    %1400 = vmatpush1.msra.mxu0 0.0
    %1401 = vmatprep.subr.mxu0 0.0
    %1402 = vmatpush1.msra.mxu0 0.0
    %1403 = vmatprep.subr.mxu0 0.0
    %1404 = vmatpush1.msra.mxu0 0.0
    %1405 = vmatprep.subr.mxu0 0.0
    %1406 = vmatpush1.msra.mxu0 0.0
    %1407 = vmatprep.subr.mxu0 0.0
    %1408 = vmatpush1.msra.mxu0 0.0
    %1409 = vmatprep.subr.mxu0 0.0
    %1410 = vmatpush1.msra.mxu0 0.0
    %1411 = vmatprep.subr.mxu0 0.0
    %1412 = vmatpush1.msra.mxu0 0.0
    %1413 = vmatprep.subr.mxu0 0.0
    %1414 = vmatpush1.msra.mxu0 0.0
    %1415 = vmatprep.subr.mxu0 0.0
    %1416 = vmatpush1.msra.mxu0 0.0
    %1417 = vmatprep.subr.mxu0 0.0
    %1418 = vmatpush1.msra.mxu0 0.0
    %1419 = vmatprep.subr.mxu0 0.0
    %1420 = vmatpush1.msra.mxu0 0.0
    %1421 = vmatprep.subr.mxu0 0.0
    %1422 = vmatpush1.msra.mxu0 0.0
    %1423 = vmatprep.subr.mxu0 0.0
    %1424 = vmatpush1.msra.mxu0 0.0
    %1425 = vmatprep.subr.mxu0 0.0
    %1426 = vmatpush1.msra.mxu0 0.0
    %1427 = vmatprep.subr.mxu0 0.0
    %1428 = vmatpush1.msra.mxu0 0.0
    %1429 = vmatprep.subr.mxu0 0.0
    %1430 = vmatpush1.msra.mxu0 0.0
    %1431 = vmatprep.subr.mxu0 0.0
    %1432 = vmatpush1.msra.mxu0 0.0
    %1433 = vmatprep.subr.mxu0 0.0
    %1434 = vmatpush1.msra.mxu0 0.0
    %1435 = vmatprep.subr.mxu0 0.0
    %1436 = vmatpush1.msra.mxu0 0.0
    %1437 = vmatprep.subr.mxu0 0.0
    %1438 = vmatpush1.msra.mxu0 0.0
    %1439 = vmatprep.subr.mxu0 0.0
    %1440 = vmatpush1.msra.mxu0 0.0
    %1441 = vmatprep.mubr.f32.mxu0 0.0
    %1442 = vmatmul.mubr.f32.gmra.mrb[0].mxu0 %v1375
    %v1443 = vpop.f32.mrb[0].mxu0
    %v1444 = vadd.f32 0.0, %v1443
    %v1445 = vpop.f32.mrb[0].mxu0
    %v1446 = vadd.f32 0.0, %v1445
    %1447 = vdwg.mxu0
    %v1448 = vld [vmem:[%s354] sm:$0xf]
    %v1449 = vld [vmem:[#allocation2] sm:$0xf]
    %v1450 = vadd.f32 %v1448, %v1444
    %v1452 = vrot.slane %v1449, 2
    %v1454 = vadd.f32 %v1452, %v1446
    %v1455 = vxor.u32 %v1450, 2147483648
    %v1456 = vmul.f32 %v1455, 1.442695
    %v1457 = vpow.pop %v1456
    %v1458 = vadd.f32 %v1457, 1.0
    %v1459 = vrcp.pop %v1458
    %v1460 = vmul.f32 1.0, %v1459
    %v1461 = vxor.u32 %v1454, 2147483648
    %v1462 = vmul.f32 %v1461, 1.442695
    %v1463 = vpow.pop %v1462
    %v1464 = vadd.f32 %v1463, 1.0
    %v1465 = vrcp.pop %v1464
    %v1466 = vmul.f32 1.0, %v1465
    %v1467 = vtanh.pop %v1450
    %v1468 = vtanh.pop %v1454
    %v1469 = vmul.f32 %v1460, %v1325
    %1471 = vrot.lane.b32.xlu0 %v1467, 32
    %v1472 = vpop.permute.xlu0 %1471
    %v1474 = vmul.f32 %v1460, %v1472
    %1476 = vrot.lane.b32.xlu0 %v1474, 32
    %v1477 = vpop.permute.xlu0 %1476
    %v1479 = vadd.f32 %v1469, %v1477
    %v1480 = vmul.f32 %v1466, %v1336
    %1482 = vrot.lane.b32.xlu0 %v1468, 32
    %v1483 = vpop.permute.xlu0 %1482
    %v1485 = vmul.f32 %v1466, %v1483
    %1487 = vrot.lane.b32.xlu0 %v1485, 32
    %v1488 = vpop.permute.xlu0 %1487
    %v1490 = vadd.f32 %v1480, %v1488
    %v1491 = vtanh.pop %v1479
    %1493 = vrot.lane.b32.xlu0 %v1491, 32
    %v1494 = vpop.permute.xlu0 %1493
    %v1496 = vmul.f32 %v1460, %v1494
    %v1497 = vtanh.pop %v1490
    %1499 = vrot.lane.b32.xlu0 %v1497, 32
    %v1500 = vpop.permute.xlu0 %1499
    %v1502 = vmul.f32 %v1466, %v1500
    %v1505 = vunpack.c.l.s4 1983009808
    %v1506 = vunpack.c.0.s8 %v1505
    %v1507 = vlaneseq
    %v1508 = vshrl.u32 %v1507, 7
    %v1509 = vsub.s32 %v1506, %v1508
    %v1510 = vrot.slane %v1496, %v1509
    %1511 = vrot.lane.b32.xlu0 %v1510, 64
    %v1512 = vpop.permute.xlu0 %1511
    %1514 = vst.msk [vmem:[%s433] sm:$0x3] %vm420, %v1512
    %v1517 = vunpack.c.l.s4 1983009808
    %v1518 = vunpack.c.0.s8 %v1517
    %v1519 = vlaneseq
    %v1520 = vshrl.u32 %v1519, 7
    %v1521 = vsub.s32 %v1518, %v1520
    %v1522 = vrot.slane %v1502, %v1521
    %1523 = vrot.lane.b32.xlu0 %v1522, 96
    %v1524 = vpop.permute.xlu0 %1523
    %1526 = vst.msk [vmem:[#allocation3] sm:$0x3] %vm434, %v1524
    %v1527 = vld [vmem:[#allocation3] sm:$0x3]
    %v1528 = vld [vmem:[#allocation3 + $0x2] sm:$0x3]
    %v1529 = vld [vmem:[#allocation3 + $0x4] sm:$0x3]
    %v1530 = vld [vmem:[#allocation3 + $0x6] sm:$0x3]
    %v1531 = vld [vmem:[#allocation3 + $0x8] sm:$0x3]
    %v1532 = vld [vmem:[#allocation3 + $0xa] sm:$0x3]
    %v1533 = vld [vmem:[#allocation3 + $0xc] sm:$0x3]
    %v1534 = vld [vmem:[#allocation3 + $0xe] sm:$0x3]
    %v1535 = vld [vmem:[%s5] sm:$0x1]
    %v1536 = vld [vmem:[%s6] sm:$0x1]
    %vm1537 = vcmask 517120
    %v1538 = vsel %vm1537, %v1527, 0.0
    %1539 = vadd.xlane.f32.xlu0 %v1538
    %v1540 = vpop.xlane.xlu0 %1539
    %v1541 = vsel %vm1537, %v1528, 0.0
    %1542 = vadd.xlane.f32.xlu0 %v1541
    %v1543 = vpop.xlane.xlu0 %1542
    %v1544 = vsel %vm1537, %v1529, 0.0
    %1545 = vadd.xlane.f32.xlu0 %v1544
    %v1546 = vpop.xlane.xlu0 %1545
    %v1547 = vsel %vm1537, %v1530, 0.0
    %1548 = vadd.xlane.f32.xlu0 %v1547
    %v1549 = vpop.xlane.xlu0 %1548
    %v1550 = vsel %vm1537, %v1531, 0.0
    %1551 = vadd.xlane.f32.xlu0 %v1550
    %v1552 = vpop.xlane.xlu0 %1551
    %v1553 = vsel %vm1537, %v1532, 0.0
    %1554 = vadd.xlane.f32.xlu0 %v1553
    %v1555 = vpop.xlane.xlu0 %1554
    %v1556 = vsel %vm1537, %v1533, 0.0
    %1557 = vadd.xlane.f32.xlu0 %v1556
    %v1558 = vpop.xlane.xlu0 %1557
    %v1559 = vsel %vm1537, %v1534, 0.0
    %1560 = vadd.xlane.f32.xlu0 %v1559
    %v1561 = vpop.xlane.xlu0 %1560
    %v1562 = vrcp.pop 64.0
    %v1563 = vmul.f32 %v1540, %v1562
    %v1564 = vmul.f32 %v1543, %v1562
    %v1565 = vmul.f32 %v1546, %v1562
    %v1566 = vmul.f32 %v1549, %v1562
    %v1567 = vmul.f32 %v1552, %v1562
    %v1568 = vmul.f32 %v1555, %v1562
    %v1569 = vmul.f32 %v1558, %v1562
    %v1570 = vmul.f32 %v1561, %v1562
    %v1571 = vsub.f32 %v1527, %v1563
    %v1572 = vsub.f32 %v1528, %v1564
    %v1573 = vsub.f32 %v1529, %v1565
    %v1574 = vsub.f32 %v1530, %v1566
    %v1575 = vsub.f32 %v1531, %v1567
    %v1576 = vsub.f32 %v1532, %v1568
    %v1577 = vsub.f32 %v1533, %v1569
    %v1578 = vsub.f32 %v1534, %v1570
    %v1579 = vmul.f32 %v1571, %v1571
    %v1580 = vmul.f32 %v1572, %v1572
    %v1581 = vmul.f32 %v1573, %v1573
    %v1582 = vmul.f32 %v1574, %v1574
    %v1583 = vmul.f32 %v1575, %v1575
    %v1584 = vmul.f32 %v1576, %v1576
    %v1585 = vmul.f32 %v1577, %v1577
    %v1586 = vmul.f32 %v1578, %v1578
    %v1587 = vsel %vm1537, %v1579, 0.0
    %1588 = vadd.xlane.f32.xlu0 %v1587
    %v1589 = vpop.xlane.xlu0 %1588
    %v1590 = vsel %vm1537, %v1580, 0.0
    %1591 = vadd.xlane.f32.xlu0 %v1590
    %v1592 = vpop.xlane.xlu0 %1591
    %v1593 = vsel %vm1537, %v1581, 0.0
    %1594 = vadd.xlane.f32.xlu0 %v1593
    %v1595 = vpop.xlane.xlu0 %1594
    %v1596 = vsel %vm1537, %v1582, 0.0
    %1597 = vadd.xlane.f32.xlu0 %v1596
    %v1598 = vpop.xlane.xlu0 %1597
    %v1599 = vsel %vm1537, %v1583, 0.0
    %1600 = vadd.xlane.f32.xlu0 %v1599
    %v1601 = vpop.xlane.xlu0 %1600
    %v1602 = vsel %vm1537, %v1584, 0.0
    %1603 = vadd.xlane.f32.xlu0 %v1602
    %v1604 = vpop.xlane.xlu0 %1603
    %v1605 = vsel %vm1537, %v1585, 0.0
    %1606 = vadd.xlane.f32.xlu0 %v1605
    %v1607 = vpop.xlane.xlu0 %1606
    %v1608 = vsel %vm1537, %v1586, 0.0
    %1609 = vadd.xlane.f32.xlu0 %v1608
    %v1610 = vpop.xlane.xlu0 %1609
    %v1611 = vmul.f32 %v1589, %v1562
    %v1612 = vmul.f32 %v1592, %v1562
    %v1613 = vmul.f32 %v1595, %v1562
    %v1614 = vmul.f32 %v1598, %v1562
    %v1615 = vmul.f32 %v1601, %v1562
    %v1616 = vmul.f32 %v1604, %v1562
    %v1617 = vmul.f32 %v1607, %v1562
    %v1618 = vmul.f32 %v1610, %v1562
    %v1619 = vadd.f32 %v1611, 1e-05
    %v1620 = vadd.f32 %v1612, 1e-05
    %v1621 = vadd.f32 %v1613, 1e-05
    %v1622 = vadd.f32 %v1614, 1e-05
    %v1623 = vadd.f32 %v1615, 1e-05
    %v1624 = vadd.f32 %v1616, 1e-05
    %v1625 = vadd.f32 %v1617, 1e-05
    %v1626 = vadd.f32 %v1618, 1e-05
    %v1627 = vrsqrt.pop %v1619
    %v1628 = vrsqrt.pop %v1620
    %v1629 = vrsqrt.pop %v1621
    %v1630 = vrsqrt.pop %v1622
    %v1631 = vrsqrt.pop %v1623
    %v1632 = vrsqrt.pop %v1624
    %v1633 = vrsqrt.pop %v1625
    %v1634 = vrsqrt.pop %v1626
    %v1635 = vmul.f32 %v1571, %v1627
    %v1636 = vmul.f32 %v1572, %v1628
    %v1637 = vmul.f32 %v1573, %v1629
    %v1638 = vmul.f32 %v1574, %v1630
    %v1639 = vmul.f32 %v1575, %v1631
    %v1640 = vmul.f32 %v1576, %v1632
    %v1641 = vmul.f32 %v1577, %v1633
    %v1642 = vmul.f32 %v1578, %v1634
    %v1644 = vlaneseq
    %v1645 = vshrl.u32 %v1644, 7
    %v1646 = vsub.s32 0, %v1645
    %v1647 = vrot.slane %v1535, %v1646
    %v1649 = vmul.f32 %v1635, %v1647
    %v1650 = vmul.f32 %v1636, %v1647
    %v1651 = vmul.f32 %v1637, %v1647
    %v1652 = vmul.f32 %v1638, %v1647
    %v1653 = vmul.f32 %v1639, %v1647
    %v1654 = vmul.f32 %v1640, %v1647
    %v1655 = vmul.f32 %v1641, %v1647
    %v1656 = vmul.f32 %v1642, %v1647
    %v1658 = vlaneseq
    %v1659 = vshrl.u32 %v1658, 7
    %v1660 = vsub.s32 0, %v1659
    %v1661 = vrot.slane %v1536, %v1660
    %v1663 = vadd.f32 %v1649, %v1661
    %v1664 = vadd.f32 %v1650, %v1661
    %v1665 = vadd.f32 %v1651, %v1661
    %v1666 = vadd.f32 %v1652, %v1661
    %v1667 = vadd.f32 %v1653, %v1661
    %v1668 = vadd.f32 %v1654, %v1661
    %v1669 = vadd.f32 %v1655, %v1661
    %v1670 = vadd.f32 %v1656, %v1661
    %v1671 = vld [vmem:[%s7] sm:$0x1]
    %v1673 = vlaneseq
    %v1674 = vshrl.u32 %v1673, 7
    %v1675 = vsub.s32 0, %v1674
    %v1676 = vrot.slane %v1671, %v1675
    %v1678 = vmul.f32 %v1663, %v1676
    %v1679 = vmul.f32 %v1664, %v1676
    %v1680 = vmul.f32 %v1665, %v1676
    %v1681 = vmul.f32 %v1666, %v1676
    %v1682 = vmul.f32 %v1667, %v1676
    %v1683 = vmul.f32 %v1668, %v1676
    %v1684 = vmul.f32 %v1669, %v1676
    %v1685 = vmul.f32 %v1670, %v1676
    %v1686 = vsel %vm1537, %v1678, 0.0
    %1687 = vadd.xlane.f32.xlu0 %v1686
    %v1688 = vpop.xlane.xlu0 %1687
    %v1689 = vsel %vm1537, %v1679, 0.0
    %1690 = vadd.xlane.f32.xlu0 %v1689
    %v1691 = vpop.xlane.xlu0 %1690
    %v1692 = vsel %vm1537, %v1680, 0.0
    %1693 = vadd.xlane.f32.xlu0 %v1692
    %v1694 = vpop.xlane.xlu0 %1693
    %v1695 = vsel %vm1537, %v1681, 0.0
    %1696 = vadd.xlane.f32.xlu0 %v1695
    %v1697 = vpop.xlane.xlu0 %1696
    %v1698 = vsel %vm1537, %v1682, 0.0
    %1699 = vadd.xlane.f32.xlu0 %v1698
    %v1700 = vpop.xlane.xlu0 %1699
    %v1701 = vsel %vm1537, %v1683, 0.0
    %1702 = vadd.xlane.f32.xlu0 %v1701
    %v1703 = vpop.xlane.xlu0 %1702
    %v1704 = vsel %vm1537, %v1684, 0.0
    %1705 = vadd.xlane.f32.xlu0 %v1704
    %v1706 = vpop.xlane.xlu0 %1705
    %v1707 = vsel %vm1537, %v1685, 0.0
    %1708 = vadd.xlane.f32.xlu0 %v1707
    %v1709 = vpop.xlane.xlu0 %1708
    %v1718 = vlaneseq
    %v1719 = vand.u32 %v1718, 127
    %v1720 = vlaneseq
    %v1721 = vshrl.u32 %v1720, 7
    %v1722 = vsub.s32 %v1719, %v1721
    %v1723 = vrot.slane %v1688, %v1722
    %v1724 = vlaneseq
    %v1725 = vshrl.u32 %v1724, 7
    %v1726 = vsub.s32 %v1719, %v1725
    %v1727 = vrot.slane %v1691, %v1726
    %v1728 = vlaneseq
    %v1729 = vshrl.u32 %v1728, 7
    %v1730 = vsub.s32 %v1719, %v1729
    %v1731 = vrot.slane %v1694, %v1730
    %v1732 = vlaneseq
    %v1733 = vshrl.u32 %v1732, 7
    %v1734 = vsub.s32 %v1719, %v1733
    %v1735 = vrot.slane %v1697, %v1734
    %v1736 = vlaneseq
    %v1737 = vshrl.u32 %v1736, 7
    %v1738 = vsub.s32 %v1719, %v1737
    %v1739 = vrot.slane %v1700, %v1738
    %v1740 = vlaneseq
    %v1741 = vshrl.u32 %v1740, 7
    %v1742 = vsub.s32 %v1719, %v1741
    %v1743 = vrot.slane %v1703, %v1742
    %v1744 = vlaneseq
    %v1745 = vshrl.u32 %v1744, 7
    %v1746 = vsub.s32 %v1719, %v1745
    %v1747 = vrot.slane %v1706, %v1746
    %v1748 = vlaneseq
    %v1749 = vshrl.u32 %v1748, 7
    %v1750 = vsub.s32 %v1719, %v1749
    %v1751 = vrot.slane %v1709, %v1750
    %vm1752 = vcmask 1041409
    %v1753 = vsel %vm1752, %v1727, %v1723
    %vm1754 = vcmask 1042434
    %v1755 = vsel %vm1754, %v1731, %v1753
    %vm1756 = vcmask 1043459
    %v1757 = vsel %vm1756, %v1735, %v1755
    %vm1758 = vcmask 1044484
    %v1759 = vsel %vm1758, %v1739, %v1757
    %vm1760 = vcmask 1045509
    %v1761 = vsel %vm1760, %v1743, %v1759
    %vm1762 = vcmask 1046534
    %v1763 = vsel %vm1762, %v1747, %v1761
    %vm1764 = vcmask 1047559
    %v1765 = vsel %vm1764, %v1751, %v1763
    %1767 = vxpose.xlu0.b32.start [1/16] %v1765, 128
    %1768 = vxpose.xlu0.b32.cont [2/16] 0.0, 128
    %1769 = vxpose.xlu0.b32.cont [3/16] 0.0, 128
    %1770 = vxpose.xlu0.b32.cont [4/16] 0.0, 128
    %1771 = vxpose.xlu0.b32.cont [5/16] 0.0, 128
    %1772 = vxpose.xlu0.b32.cont [6/16] 0.0, 128
    %1773 = vxpose.xlu0.b32.cont [7/16] 0.0, 128
    %1774 = vxpose.xlu0.b32.cont [8/16] 0.0, 128
    %1775 = vxpose.xlu0.b32.cont [9/16] 0.0, 128
    %1776 = vxpose.xlu0.b32.cont [10/16] 0.0, 128
    %1777 = vxpose.xlu0.b32.cont [11/16] 0.0, 128
    %1778 = vxpose.xlu0.b32.cont [12/16] 0.0, 128
    %1779 = vxpose.xlu0.b32.cont [13/16] 0.0, 128
    %1780 = vxpose.xlu0.b32.cont [14/16] 0.0, 128
    %1781 = vxpose.xlu0.b32.cont [15/16] 0.0, 128
    %1782 = vxpose.xlu0.b32.end [16/16] 0.0, 128
    %v1783 = vpop.trf.xlu0
    %v1784 = vpop.trf.xlu0
    %v1785 = vpop.trf.xlu0
    %v1786 = vpop.trf.xlu0
    %v1787 = vpop.trf.xlu0
    %v1788 = vpop.trf.xlu0
    %v1789 = vpop.trf.xlu0
    %v1790 = vpop.trf.xlu0
    %v1791 = vpop.trf.xlu0
    %v1792 = vpop.trf.xlu0
    %v1793 = vpop.trf.xlu0
    %v1794 = vpop.trf.xlu0
    %v1795 = vpop.trf.xlu0
    %v1796 = vpop.trf.xlu0
    %v1797 = vpop.trf.xlu0
    %v1798 = vpop.trf.xlu0
    %v1799 = vld [vmem:[#allocation4] sm:$0x1]
    %v1801 = vlaneseq
    %v1802 = vshrl.u32 %v1801, 7
    %v1803 = vsub.s32 0, %v1802
    %v1804 = vrot.slane %v1799, %v1803
    %1805 = vset.pattern.permute.xlu0 0
    %1806 = vperm.xlu0 %1805, %v1804
    %v1807 = vpop.permute.xlu0 %1806
    %v1809 = vadd.f32 %v1783, %v1807
    %v1810 = vld [vmem:[%s1] sm:$0x3]
    %vm1811 = vcmp.ne.s32.totalorder %v1810, 0
    %v1812 = vsel %vm1811, %v1809, -inf
    %vm1813 = vcmask 58368
    %v1814 = vsel %vm1813, %v1812, -inf
    %1815 = vmax.xlane.f32.xlu0 %v1814
    %v1816 = vpop.xlane.xlu0 %1815
    %v1817 = vsub.f32 %v1812, %v1816
    %v1818 = vmul.f32 %v1817, 1.442695
    %v1819 = vpow.pop %v1818
    %v1820 = vsel %vm1813, %v1819, 0.0
    %1821 = vadd.xlane.f32.xlu0 %v1820
    %v1822 = vpop.xlane.xlu0 %1821
    %v1823 = vrcp.pop %v1822
    %v1824 = vmul.f32 %v1819, %v1823
    %1825 = vst.msk [vmem:[#allocation9] sm:$0x3] %vm1813, %v1824
    %1826 = vxpose.xlu0.b32.start [1/16] %v1824, 128
    %1827 = vxpose.xlu0.b32.cont [2/16] 0.0, 128
    %1828 = vxpose.xlu0.b32.cont [3/16] 0.0, 128
    %1829 = vxpose.xlu0.b32.cont [4/16] 0.0, 128
    %1830 = vxpose.xlu0.b32.cont [5/16] 0.0, 128
    %1831 = vxpose.xlu0.b32.cont [6/16] 0.0, 128
    %1832 = vxpose.xlu0.b32.cont [7/16] 0.0, 128
    %1833 = vxpose.xlu0.b32.cont [8/16] 0.0, 128
    %1834 = vxpose.xlu0.b32.cont [9/16] 0.0, 128
    %1835 = vxpose.xlu0.b32.cont [10/16] 0.0, 128
    %1836 = vxpose.xlu0.b32.cont [11/16] 0.0, 128
    %1837 = vxpose.xlu0.b32.cont [12/16] 0.0, 128
    %1838 = vxpose.xlu0.b32.cont [13/16] 0.0, 128
    %1839 = vxpose.xlu0.b32.cont [14/16] 0.0, 128
    %1840 = vxpose.xlu0.b32.cont [15/16] 0.0, 128
    %1841 = vxpose.xlu0.b32.end [16/16] 0.0, 128
    %v1842 = vpop.trf.xlu0
    %v1843 = vpop.trf.xlu0
    %v1844 = vpop.trf.xlu0
    %v1845 = vpop.trf.xlu0
    %v1846 = vpop.trf.xlu0
    %v1847 = vpop.trf.xlu0
    %v1848 = vpop.trf.xlu0
    %v1849 = vpop.trf.xlu0
    %v1850 = vpop.trf.xlu0
    %v1851 = vpop.trf.xlu0
    %v1852 = vpop.trf.xlu0
    %v1853 = vpop.trf.xlu0
    %v1854 = vpop.trf.xlu0
    %v1855 = vpop.trf.xlu0
    %v1856 = vpop.trf.xlu0
    %v1857 = vpop.trf.xlu0
    %v1858 = vlaneseq
    %v1859 = vshrl.u32 %v1858, 7
    %v1860 = vsub.s32 0, %v1859
    %v1861 = vrot.slane %v1842, %v1860
    %1863 = vbcast.lane.b32.xlu0 %v1861, 256
    %v1864 = vpop.permute.xlu0 %1863
    %v1865 = vlaneseq
    %v1866 = vshrl.u32 %v1865, 7
    %v1867 = vsub.s32 1, %v1866
    %v1868 = vrot.slane %v1842, %v1867
    %1870 = vbcast.lane.b32.xlu0 %v1868, 256
    %v1871 = vpop.permute.xlu0 %1870
    %v1872 = vlaneseq
    %v1873 = vshrl.u32 %v1872, 7
    %v1874 = vsub.s32 2, %v1873
    %v1875 = vrot.slane %v1842, %v1874
    %1877 = vbcast.lane.b32.xlu0 %v1875, 256
    %v1878 = vpop.permute.xlu0 %1877
    %v1879 = vlaneseq
    %v1880 = vshrl.u32 %v1879, 7
    %v1881 = vsub.s32 3, %v1880
    %v1882 = vrot.slane %v1842, %v1881
    %1884 = vbcast.lane.b32.xlu0 %v1882, 256
    %v1885 = vpop.permute.xlu0 %1884
    %v1886 = vlaneseq
    %v1887 = vshrl.u32 %v1886, 7
    %v1888 = vsub.s32 4, %v1887
    %v1889 = vrot.slane %v1842, %v1888
    %1891 = vbcast.lane.b32.xlu0 %v1889, 256
    %v1892 = vpop.permute.xlu0 %1891
    %v1893 = vlaneseq
    %v1894 = vshrl.u32 %v1893, 7
    %v1895 = vsub.s32 5, %v1894
    %v1896 = vrot.slane %v1842, %v1895
    %1898 = vbcast.lane.b32.xlu0 %v1896, 256
    %v1899 = vpop.permute.xlu0 %1898
    %v1900 = vlaneseq
    %v1901 = vshrl.u32 %v1900, 7
    %v1902 = vsub.s32 6, %v1901
    %v1903 = vrot.slane %v1842, %v1902
    %1905 = vbcast.lane.b32.xlu0 %v1903, 256
    %v1906 = vpop.permute.xlu0 %1905
    %v1907 = vlaneseq
    %v1908 = vshrl.u32 %v1907, 7
    %v1909 = vsub.s32 7, %v1908
    %v1910 = vrot.slane %v1842, %v1909
    %1912 = vbcast.lane.b32.xlu0 %v1910, 256
    %v1913 = vpop.permute.xlu0 %1912
    %v1914 = vmul.f32 %v1864, %v1663
    %v1915 = vmul.f32 %v1871, %v1664
    %v1916 = vmul.f32 %v1878, %v1665
    %v1917 = vmul.f32 %v1885, %v1666
    %v1918 = vmul.f32 %v1892, %v1667
    %v1919 = vmul.f32 %v1899, %v1668
    %v1920 = vmul.f32 %v1906, %v1669
    %v1921 = vmul.f32 %v1913, %v1670
    %v1922 = vsel %vm1537, %v1914, 0.0
    %v1923 = vsel %vm1537, %v1915, 0.0
    %v1924 = vadd.f32 %v1922, %v1923
    %v1925 = vsel %vm1537, %v1916, 0.0
    %v1926 = vadd.f32 %v1924, %v1925
    %v1927 = vsel %vm1537, %v1917, 0.0
    %v1928 = vadd.f32 %v1926, %v1927
    %v1929 = vsel %vm1537, %v1918, 0.0
    %v1930 = vadd.f32 %v1928, %v1929
    %v1931 = vsel %vm1537, %v1919, 0.0
    %v1932 = vadd.f32 %v1930, %v1931
    %v1933 = vsel %vm1537, %v1920, 0.0
    %v1934 = vadd.f32 %v1932, %v1933
    %v1935 = vsel %vm1537, %v1921, 0.0
    %v1936 = vadd.f32 %v1934, %v1935
    %v1937 = vsel %vm1537, %v1936, 0.0
    %1938 = vadd.xlane.f32.xlu0 %v1937
    %v1939 = vpop.xlane.xlu0 %1938
    %v1940 = vmul.f32 %v1939, %v1562
    %v1941 = vsub.f32 %v1936, %v1940
    %v1942 = vmul.f32 %v1941, %v1941
    %v1943 = vsel %vm1537, %v1942, 0.0
    %1944 = vadd.xlane.f32.xlu0 %v1943
    %v1945 = vpop.xlane.xlu0 %1944
    %v1946 = vmul.f32 %v1945, %v1562
    %v1947 = vadd.f32 %v1946, 1e-05
    %v1948 = vrsqrt.pop %v1947
    %v1949 = vmul.f32 %v1941, %v1948
    %v1950 = vmul.f32 %v1949, %v1647
    %v1951 = vadd.f32 %v1950, %v1661
    %v1952 = vld [vmem:[%s9] sm:$0xff]
    %v1953 = vld [vmem:[%s9 + $0x8] sm:$0xff]
    %v1954 = vld [vmem:[%s9 + $0x10] sm:$0xff]
    %v1955 = vld [vmem:[%s9 + $0x18] sm:$0xff]
    %v1956 = vld [vmem:[%s9 + $0x20] sm:$0xff]
    %v1957 = vld [vmem:[%s9 + $0x28] sm:$0xff]
    %v1958 = vld [vmem:[%s9 + $0x30] sm:$0xff]
    %v1959 = vld [vmem:[%s9 + $0x38] sm:$0xff]
    %v1960 = vld [vmem:[%s10] sm:$0x1]
    %v1962 = vlaneseq
    %v1963 = vshrl.u32 %v1962, 7
    %v1964 = vsub.s32 0, %v1963
    %v1965 = vrot.slane %v1960, %v1964
    %v1968 = vsel %vm278, %v1951, 0
    %1970 = vmatprep.subr.mxu0 0.0
    %1971 = vmatpush1.msra.mxu0 %v1952
    %1972 = vmatprep.subr.mxu0 0.0
    %1973 = vmatpush1.msra.mxu0 %v1953
    %1974 = vmatprep.subr.mxu0 0.0
    %1975 = vmatpush1.msra.mxu0 %v1954
    %1976 = vmatprep.subr.mxu0 0.0
    %1977 = vmatpush1.msra.mxu0 %v1955
    %1978 = vmatprep.subr.mxu0 0.0
    %1979 = vmatpush1.msra.mxu0 %v1956
    %1980 = vmatprep.subr.mxu0 0.0
    %1981 = vmatpush1.msra.mxu0 %v1957
    %1982 = vmatprep.subr.mxu0 0.0
    %1983 = vmatpush1.msra.mxu0 %v1958
    %1984 = vmatprep.subr.mxu0 0.0
    %1985 = vmatpush1.msra.mxu0 %v1959
    %1986 = vmatprep.subr.mxu0 0.0
    %1987 = vmatpush1.msra.mxu0 0.0
    %1988 = vmatprep.subr.mxu0 0.0
    %1989 = vmatpush1.msra.mxu0 0.0
    %1990 = vmatprep.subr.mxu0 0.0
    %1991 = vmatpush1.msra.mxu0 0.0
    %1992 = vmatprep.subr.mxu0 0.0
    %1993 = vmatpush1.msra.mxu0 0.0
    %1994 = vmatprep.subr.mxu0 0.0
    %1995 = vmatpush1.msra.mxu0 0.0
    %1996 = vmatprep.subr.mxu0 0.0
    %1997 = vmatpush1.msra.mxu0 0.0
    %1998 = vmatprep.subr.mxu0 0.0
    %1999 = vmatpush1.msra.mxu0 0.0
    %2000 = vmatprep.subr.mxu0 0.0
    %2001 = vmatpush1.msra.mxu0 0.0
    %2002 = vmatprep.subr.mxu0 0.0
    %2003 = vmatpush1.msra.mxu0 0.0
    %2004 = vmatprep.subr.mxu0 0.0
    %2005 = vmatpush1.msra.mxu0 0.0
    %2006 = vmatprep.subr.mxu0 0.0
    %2007 = vmatpush1.msra.mxu0 0.0
    %2008 = vmatprep.subr.mxu0 0.0
    %2009 = vmatpush1.msra.mxu0 0.0
    %2010 = vmatprep.subr.mxu0 0.0
    %2011 = vmatpush1.msra.mxu0 0.0
    %2012 = vmatprep.subr.mxu0 0.0
    %2013 = vmatpush1.msra.mxu0 0.0
    %2014 = vmatprep.subr.mxu0 0.0
    %2015 = vmatpush1.msra.mxu0 0.0
    %2016 = vmatprep.subr.mxu0 0.0
    %2017 = vmatpush1.msra.mxu0 0.0
    %2018 = vmatprep.subr.mxu0 0.0
    %2019 = vmatpush1.msra.mxu0 0.0
    %2020 = vmatprep.subr.mxu0 0.0
    %2021 = vmatpush1.msra.mxu0 0.0
    %2022 = vmatprep.subr.mxu0 0.0
    %2023 = vmatpush1.msra.mxu0 0.0
    %2024 = vmatprep.subr.mxu0 0.0
    %2025 = vmatpush1.msra.mxu0 0.0
    %2026 = vmatprep.subr.mxu0 0.0
    %2027 = vmatpush1.msra.mxu0 0.0
    %2028 = vmatprep.subr.mxu0 0.0
    %2029 = vmatpush1.msra.mxu0 0.0
    %2030 = vmatprep.subr.mxu0 0.0
    %2031 = vmatpush1.msra.mxu0 0.0
    %2032 = vmatprep.subr.mxu0 0.0
    %2033 = vmatpush1.msra.mxu0 0.0
    %2034 = vmatprep.mubr.f32.mxu0 0.0
    %2035 = vmatmul.mubr.f32.gmra.mrb[0].mxu0 %v1968
    %v2036 = vpop.f32.mrb[0].mxu0
    %v2037 = vadd.f32 %v1965, %v2036
    %v2038 = vpop.f32.mrb[0].mxu0
    %2039 = vdwg.mxu0
    %vm2040 = vcmask 25600
    %2041 = vst.msk [vmem:[#allocation8] sm:$0x3] %vm2040, %v2037
    // Predicated region
    $region50: #{tpu_custom_call.1} parent=1 // pred_check
      _
    $region51: #{tpu_custom_call.1} parent=1 // pred_check_branch
      %2043 = sbr.rel (0) target = $region53
    $region52: #{tpu_custom_call.1} parent=1 // pred_region
      %s2045 = ssub.s32 32, 32
      %2046 = vsyncadd [#allocation7], %s2045
      %s2048 = sshll.u32 [#allocation8], 4
      %s2049 = int_to_ptr.vmem [resolvable:$true] %s2048
      %2051 = dma.vmem_to_hbm [thread:$0]  %s2049, 32, %s11, [#allocation7]
    $region53: #{tpu_custom_call.1} parent=1 // pred_fallthru
      _
    // Predicated region
    $region54: #{tpu_custom_call.1} parent=1 // pred_check
      _
    $region55: #{tpu_custom_call.1} parent=1 // pred_check_branch
      %2053 = sbr.rel (0) target = $region57
    $region56: #{tpu_custom_call.1} parent=1 // pred_region
      %s2055 = ssub.s32 32, 32
      %2056 = vsyncadd [#allocation10], %s2055
      %s2058 = sshll.u32 [#allocation9], 4
      %s2059 = int_to_ptr.vmem [resolvable:$true] %s2058
      %2061 = dma.vmem_to_hbm [thread:$0]  %s2059, 32, %s12, [#allocation10]
    $region57: #{tpu_custom_call.1} parent=1 // pred_fallthru
      _
    // Predicated region
    $region58: #{tpu_custom_call.1} parent=1 // pred_check
      _
    $region59: #{tpu_custom_call.1} parent=1 // pred_check_branch
      %2063 = sbr.rel (0) target = $region61
    $region60: #{tpu_custom_call.1} parent=1 // pred_region
      %2064 = dma.done [#allocation7], 32
    $region61: #{tpu_custom_call.1} parent=1 // pred_fallthru
      _
    // Predicated region
    $region62: #{tpu_custom_call.1} parent=1 // pred_check
      _
    $region63: #{tpu_custom_call.1} parent=1 // pred_check_branch
      %2066 = sbr.rel (0) target = $region65
    $region64: #{tpu_custom_call.1} parent=1 // pred_region
      %2067 = dma.done [#allocation10], 32
    $region65: #{tpu_custom_call.1} parent=1 // pred_fallthru
      _
    %2068 = vsyncpa [#allocation6], 1
    %2069 = vsyncpa [#allocation7], 1
    %2070 = vsyncpa [#allocation10], 1

</llo_original>
